<compile_context>
chip_gen: v7x
topology: tpu7x:2x2x1
jax: 0.10.0
libtpu: 0.0.40
codegen_flags: <defaults>
</compile_context>

<pallas_src>
import jax
import jax.numpy as jnp
from jax.experimental import pallas as pl
from jax.experimental.pallas import tpu as pltpu


def _unbiased_std(s1, s2, n):
    # Unbiased std from sums of (batch-mean-centered) x and x^2:
    #   var = (sum(x^2) - sum(x)^2 / n) / (n - 1)
    var = (s2 - (s1 * s1) * (1.0 / n)) * (1.0 / (n - 1.0))
    return jnp.sqrt(jnp.maximum(var, 0.0))


def _penalties_kernel(preds_ref, targets_ref, out_ref):
    p = preds_ref[...].astype(jnp.float32)   # (B, T, F)
    t = targets_ref[...].astype(jnp.float32)
    _, T, F = p.shape
    n_tf = float(T * F)

    def sums(x):
        # Raw partial sums (one lane-axis and one sublane-axis traversal).
        rF1 = jnp.sum(x, axis=-1)                                  # (B, T)
        rT1 = jnp.sum(x, axis=-2)                                  # (B, F)
        # Per-batch mean reuses the lane partials (no extra full reduction).
        m = jnp.sum(rF1, axis=-1, keepdims=True) * (1.0 / n_tf)    # (B, 1)
        # Center once by the per-batch mean (shift-invariant for all 3 stds).
        xc = x - m[:, :, None]
        xc2 = xc * xc
        sF2 = jnp.sum(xc2, axis=-1)                                # (B, T)
        sT2 = jnp.sum(xc2, axis=-2)                                # (B, F)
        # Centered first-moment partials derived from raw partials (cheap).
        sF1 = rF1 - float(F) * m                                   # (B, T)
        sT1 = rT1 - float(T) * m                                   # (B, F)
        # Joint (T,F) sums reuse the F-axis partials.
        S1 = jnp.sum(sF1, axis=-1, keepdims=True)                  # (B, 1)
        S2 = jnp.sum(sF2, axis=-1, keepdims=True)                  # (B, 1)
        return sF1, sF2, sT1, sT2, S1, S2

    pF1, pF2, pT1, pT2, pS1, pS2 = sums(p)
    tF1, tF2, tT1, tT2, tS1, tS2 = sums(t)

    # std over dim=(-2, -1): shape (B, 1)
    d_joint = _unbiased_std(pS1, pS2, n_tf) - _unbiased_std(tS1, tS2, n_tf)
    std_penalty = jnp.mean(d_joint * d_joint)

    # std over dim=-2 (reduce T): shape (B, F)
    d_T = _unbiased_std(pT1, pT2, float(T)) - _unbiased_std(tT1, tT2, float(T))
    std_penalty_T = jnp.mean(d_T * d_T)

    # std over dim=-1 (reduce F): shape (B, T)
    d_F = _unbiased_std(pF1, pF2, float(F)) - _unbiased_std(tF1, tF2, float(F))
    std_penalty_F = jnp.mean(d_F * d_F)

    # Pack the three scalars into one lane-dense row -> single unmasked store.
    lane = jax.lax.broadcasted_iota(jnp.int32, (1, 128), 1)
    row = jnp.where(lane == 0, std_penalty,
          jnp.where(lane == 1, std_penalty_T,
          jnp.where(lane == 2, std_penalty_F, 0.0)))
    out_ref[...] = row.astype(jnp.float32)


def reconstruction_penalties(preds, targets, weighted=False, split=50):
    """Forward pass of physioex ReconstructionPenalties."""
    if weighted:
        preds = preds[..., :split]
        targets = targets[..., :split]
    packed = pl.pallas_call(
        _penalties_kernel,
        in_specs=[pl.BlockSpec(memory_space=pltpu.MemorySpace.VMEM),
                  pl.BlockSpec(memory_space=pltpu.MemorySpace.VMEM)],
        out_specs=pl.BlockSpec(memory_space=pltpu.MemorySpace.VMEM),
        out_shape=jax.ShapeDtypeStruct((1, 128), jnp.float32),
    )(preds, targets)
    row = packed[0]
    return row[0], row[1], row[2]


def _reference(preds, targets, weighted=False, split=50):
    # Pure-JAX reference matching torch semantics (unbiased std).
    if weighted:
        preds = preds[..., :split]
        targets = targets[..., :split]
    std = lambda x, ax: jnp.std(x, axis=ax, ddof=1)
    sp = jnp.mean((std(preds, (-2, -1)) - std(targets, (-2, -1))) ** 2)
    spT = jnp.mean((std(preds, -2) - std(targets, -2)) ** 2)
    spF = jnp.mean((std(preds, -1) - std(targets, -1)) ** 2)
    return sp, spT, spF


if __name__ == "__main__":
    import numpy as np

    key = jax.random.PRNGKey(0)
    kT, kN = jax.random.split(key)

    B, T, F = 8, 16, 32
    targets = jax.random.normal(kT, (B, T, F), dtype=jnp.float32)
    preds = targets + 0.1 * jax.random.normal(kN, (B, T, F), dtype=jnp.float32)

    # default (unweighted) path
    out = jax.block_until_ready(reconstruction_penalties(preds, targets, weighted=False))
    ref = _reference(preds, targets, weighted=False)
    for o, r in zip(out, ref):
        np.testing.assert_allclose(np.asarray(o), np.asarray(r), rtol=2e-3, atol=1e-5)

    # weighted path (slice last axis to :split before the penalties)
    out_w = jax.block_until_ready(
        reconstruction_penalties(preds, targets, weighted=True, split=16))
    ref_w = _reference(preds, targets, weighted=True, split=16)
    for o, r in zip(out_w, ref_w):
        np.testing.assert_allclose(np.asarray(o), np.asarray(r), rtol=2e-3, atol=1e-5)

    print("KERNEL_OK")
</pallas_src>

<mosaic_0001>
module attributes {stable_mosaic.version = 11 : i64} {
  func.func @_penalties_kernel(%arg0: memref<8x16x32xf32, #tpu.memory_space<vmem>>, %arg1: memref<8x16x32xf32, #tpu.memory_space<vmem>>, %arg2: memref<1x128xf32, #tpu.memory_space<vmem>>) attributes {dimension_semantics = [], scalar_prefetch = 0 : i64, scratch_operands = 0 : i64, tpu.core_type = #tpu.core_type<tc>} {
    %c0 = arith.constant 0 : index
    %c0_0 = arith.constant 0 : index
    %c0_1 = arith.constant 0 : index
    %0 = vector.load %arg0[%c0, %c0_0, %c0_1] : memref<8x16x32xf32, #tpu.memory_space<vmem>>, vector<8x16x32xf32>
    %c0_2 = arith.constant 0 : index
    %c0_3 = arith.constant 0 : index
    %c0_4 = arith.constant 0 : index
    %1 = vector.load %arg1[%c0_2, %c0_3, %c0_4] : memref<8x16x32xf32, #tpu.memory_space<vmem>>, vector<8x16x32xf32>
    %cst = arith.constant dense<0.000000e+00> : vector<8x16xf32>
    %2 = vector.multi_reduction <add>, %0, %cst [2] : vector<8x16x32xf32> to vector<8x16xf32>
    %cst_5 = arith.constant dense<0.000000e+00> : vector<8x32xf32>
    %3 = vector.multi_reduction <add>, %0, %cst_5 [1] : vector<8x16x32xf32> to vector<8x32xf32>
    %cst_6 = arith.constant dense<0.000000e+00> : vector<8xf32>
    %4 = vector.multi_reduction <add>, %2, %cst_6 [1] : vector<8x16xf32> to vector<8xf32>
    %5 = vector.shape_cast %4 : vector<8xf32> to vector<8x1xf32>
    %cst_7 = arith.constant 0.001953125 : f32
    %6 = vector.broadcast %cst_7 : f32 to vector<8x1xf32>
    %7 = arith.mulf %5, %6 : vector<8x1xf32>
    %8 = vector.shape_cast %7 : vector<8x1xf32> to vector<8x1x1xf32>
    %9 = vector.broadcast %8 : vector<8x1x1xf32> to vector<8x16x32xf32>
    %10 = arith.subf %0, %9 : vector<8x16x32xf32>
    %11 = arith.mulf %10, %10 : vector<8x16x32xf32>
    %cst_8 = arith.constant dense<0.000000e+00> : vector<8x16xf32>
    %12 = vector.multi_reduction <add>, %11, %cst_8 [2] : vector<8x16x32xf32> to vector<8x16xf32>
    %cst_9 = arith.constant dense<0.000000e+00> : vector<8x32xf32>
    %13 = vector.multi_reduction <add>, %11, %cst_9 [1] : vector<8x16x32xf32> to vector<8x32xf32>
    %cst_10 = arith.constant 3.200000e+01 : f32
    %14 = vector.broadcast %cst_10 : f32 to vector<8x1xf32>
    %15 = arith.mulf %14, %7 : vector<8x1xf32>
    %16 = vector.broadcast %15 : vector<8x1xf32> to vector<8x16xf32>
    %17 = arith.subf %2, %16 : vector<8x16xf32>
    %cst_11 = arith.constant 1.600000e+01 : f32
    %18 = vector.broadcast %cst_11 : f32 to vector<8x1xf32>
    %19 = arith.mulf %18, %7 : vector<8x1xf32>
    %20 = vector.broadcast %19 : vector<8x1xf32> to vector<8x32xf32>
    %21 = arith.subf %3, %20 : vector<8x32xf32>
    %cst_12 = arith.constant dense<0.000000e+00> : vector<8xf32>
    %22 = vector.multi_reduction <add>, %17, %cst_12 [1] : vector<8x16xf32> to vector<8xf32>
    %23 = vector.shape_cast %22 : vector<8xf32> to vector<8x1xf32>
    %cst_13 = arith.constant dense<0.000000e+00> : vector<8xf32>
    %24 = vector.multi_reduction <add>, %12, %cst_13 [1] : vector<8x16xf32> to vector<8xf32>
    %25 = vector.shape_cast %24 : vector<8xf32> to vector<8x1xf32>
    %cst_14 = arith.constant dense<0.000000e+00> : vector<8x16xf32>
    %26 = vector.multi_reduction <add>, %1, %cst_14 [2] : vector<8x16x32xf32> to vector<8x16xf32>
    %cst_15 = arith.constant dense<0.000000e+00> : vector<8x32xf32>
    %27 = vector.multi_reduction <add>, %1, %cst_15 [1] : vector<8x16x32xf32> to vector<8x32xf32>
    %cst_16 = arith.constant dense<0.000000e+00> : vector<8xf32>
    %28 = vector.multi_reduction <add>, %26, %cst_16 [1] : vector<8x16xf32> to vector<8xf32>
    %29 = vector.shape_cast %28 : vector<8xf32> to vector<8x1xf32>
    %cst_17 = arith.constant 0.001953125 : f32
    %30 = vector.broadcast %cst_17 : f32 to vector<8x1xf32>
    %31 = arith.mulf %29, %30 : vector<8x1xf32>
    %32 = vector.shape_cast %31 : vector<8x1xf32> to vector<8x1x1xf32>
    %33 = vector.broadcast %32 : vector<8x1x1xf32> to vector<8x16x32xf32>
    %34 = arith.subf %1, %33 : vector<8x16x32xf32>
    %35 = arith.mulf %34, %34 : vector<8x16x32xf32>
    %cst_18 = arith.constant dense<0.000000e+00> : vector<8x16xf32>
    %36 = vector.multi_reduction <add>, %35, %cst_18 [2] : vector<8x16x32xf32> to vector<8x16xf32>
    %cst_19 = arith.constant dense<0.000000e+00> : vector<8x32xf32>
    %37 = vector.multi_reduction <add>, %35, %cst_19 [1] : vector<8x16x32xf32> to vector<8x32xf32>
    %cst_20 = arith.constant 3.200000e+01 : f32
    %38 = vector.broadcast %cst_20 : f32 to vector<8x1xf32>
    %39 = arith.mulf %38, %31 : vector<8x1xf32>
    %40 = vector.broadcast %39 : vector<8x1xf32> to vector<8x16xf32>
    %41 = arith.subf %26, %40 : vector<8x16xf32>
    %cst_21 = arith.constant 1.600000e+01 : f32
    %42 = vector.broadcast %cst_21 : f32 to vector<8x1xf32>
    %43 = arith.mulf %42, %31 : vector<8x1xf32>
    %44 = vector.broadcast %43 : vector<8x1xf32> to vector<8x32xf32>
    %45 = arith.subf %27, %44 : vector<8x32xf32>
    %cst_22 = arith.constant dense<0.000000e+00> : vector<8xf32>
    %46 = vector.multi_reduction <add>, %41, %cst_22 [1] : vector<8x16xf32> to vector<8xf32>
    %47 = vector.shape_cast %46 : vector<8xf32> to vector<8x1xf32>
    %cst_23 = arith.constant dense<0.000000e+00> : vector<8xf32>
    %48 = vector.multi_reduction <add>, %36, %cst_23 [1] : vector<8x16xf32> to vector<8xf32>
    %49 = vector.shape_cast %48 : vector<8xf32> to vector<8x1xf32>
    %50 = arith.mulf %23, %23 : vector<8x1xf32>
    %cst_24 = arith.constant 0.001953125 : f32
    %51 = vector.broadcast %cst_24 : f32 to vector<8x1xf32>
    %52 = arith.mulf %50, %51 : vector<8x1xf32>
    %53 = arith.subf %25, %52 : vector<8x1xf32>
    %cst_25 = arith.constant 0.00195694715 : f32
    %54 = vector.broadcast %cst_25 : f32 to vector<8x1xf32>
    %55 = arith.mulf %53, %54 : vector<8x1xf32>
    %cst_26 = arith.constant 0.000000e+00 : f32
    %56 = vector.broadcast %cst_26 : f32 to vector<8x1xf32>
    %57 = arith.maximumf %55, %56 : vector<8x1xf32>
    %58 = math.sqrt %57 : vector<8x1xf32>
    %59 = arith.mulf %47, %47 : vector<8x1xf32>
    %cst_27 = arith.constant 0.001953125 : f32
    %60 = vector.broadcast %cst_27 : f32 to vector<8x1xf32>
    %61 = arith.mulf %59, %60 : vector<8x1xf32>
    %62 = arith.subf %49, %61 : vector<8x1xf32>
    %cst_28 = arith.constant 0.00195694715 : f32
    %63 = vector.broadcast %cst_28 : f32 to vector<8x1xf32>
    %64 = arith.mulf %62, %63 : vector<8x1xf32>
    %cst_29 = arith.constant 0.000000e+00 : f32
    %65 = vector.broadcast %cst_29 : f32 to vector<8x1xf32>
    %66 = arith.maximumf %64, %65 : vector<8x1xf32>
    %67 = math.sqrt %66 : vector<8x1xf32>
    %68 = arith.subf %58, %67 : vector<8x1xf32>
    %69 = arith.mulf %68, %68 : vector<8x1xf32>
    %70 = vector.shape_cast %69 : vector<8x1xf32> to vector<1x8x1xf32>
    %cst_30 = arith.constant dense<0.000000e+00> : vector<1xf32>
    %71 = vector.multi_reduction <add>, %70, %cst_30 [1, 2] : vector<1x8x1xf32> to vector<1xf32>
    %72 = vector.shape_cast %71 : vector<1xf32> to vector<1x1x1xf32>
    %73 = vector.extract %72[0, 0, 0] : f32 from vector<1x1x1xf32>
    %cst_31 = arith.constant 8.000000e+00 : f32
    %74 = arith.divf %73, %cst_31 : f32
    %75 = arith.mulf %21, %21 : vector<8x32xf32>
    %cst_32 = arith.constant 6.250000e-02 : f32
    %76 = vector.broadcast %cst_32 : f32 to vector<8x32xf32>
    %77 = arith.mulf %75, %76 : vector<8x32xf32>
    %78 = arith.subf %13, %77 : vector<8x32xf32>
    %cst_33 = arith.constant 0.0666666701 : f32
    %79 = vector.broadcast %cst_33 : f32 to vector<8x32xf32>
    %80 = arith.mulf %78, %79 : vector<8x32xf32>
    %cst_34 = arith.constant 0.000000e+00 : f32
    %81 = vector.broadcast %cst_34 : f32 to vector<8x32xf32>
    %82 = arith.maximumf %80, %81 : vector<8x32xf32>
    %83 = math.sqrt %82 : vector<8x32xf32>
    %84 = arith.mulf %45, %45 : vector<8x32xf32>
    %cst_35 = arith.constant 6.250000e-02 : f32
    %85 = vector.broadcast %cst_35 : f32 to vector<8x32xf32>
    %86 = arith.mulf %84, %85 : vector<8x32xf32>
    %87 = arith.subf %37, %86 : vector<8x32xf32>
    %cst_36 = arith.constant 0.0666666701 : f32
    %88 = vector.broadcast %cst_36 : f32 to vector<8x32xf32>
    %89 = arith.mulf %87, %88 : vector<8x32xf32>
    %cst_37 = arith.constant 0.000000e+00 : f32
    %90 = vector.broadcast %cst_37 : f32 to vector<8x32xf32>
    %91 = arith.maximumf %89, %90 : vector<8x32xf32>
    %92 = math.sqrt %91 : vector<8x32xf32>
    %93 = arith.subf %83, %92 : vector<8x32xf32>
    %94 = arith.mulf %93, %93 : vector<8x32xf32>
    %95 = vector.shape_cast %94 : vector<8x32xf32> to vector<1x8x32xf32>
    %cst_38 = arith.constant dense<0.000000e+00> : vector<1xf32>
    %96 = vector.multi_reduction <add>, %95, %cst_38 [1, 2] : vector<1x8x32xf32> to vector<1xf32>
    %97 = vector.shape_cast %96 : vector<1xf32> to vector<1x1x1xf32>
    %98 = vector.extract %97[0, 0, 0] : f32 from vector<1x1x1xf32>
    %cst_39 = arith.constant 2.560000e+02 : f32
    %99 = arith.divf %98, %cst_39 : f32
    %100 = arith.mulf %17, %17 : vector<8x16xf32>
    %cst_40 = arith.constant 3.125000e-02 : f32
    %101 = vector.broadcast %cst_40 : f32 to vector<8x16xf32>
    %102 = arith.mulf %100, %101 : vector<8x16xf32>
    %103 = arith.subf %12, %102 : vector<8x16xf32>
    %cst_41 = arith.constant 0.0322580636 : f32
    %104 = vector.broadcast %cst_41 : f32 to vector<8x16xf32>
    %105 = arith.mulf %103, %104 : vector<8x16xf32>
    %cst_42 = arith.constant 0.000000e+00 : f32
    %106 = vector.broadcast %cst_42 : f32 to vector<8x16xf32>
    %107 = arith.maximumf %105, %106 : vector<8x16xf32>
    %108 = math.sqrt %107 : vector<8x16xf32>
    %109 = arith.mulf %41, %41 : vector<8x16xf32>
    %cst_43 = arith.constant 3.125000e-02 : f32
    %110 = vector.broadcast %cst_43 : f32 to vector<8x16xf32>
    %111 = arith.mulf %109, %110 : vector<8x16xf32>
    %112 = arith.subf %36, %111 : vector<8x16xf32>
    %cst_44 = arith.constant 0.0322580636 : f32
    %113 = vector.broadcast %cst_44 : f32 to vector<8x16xf32>
    %114 = arith.mulf %112, %113 : vector<8x16xf32>
    %cst_45 = arith.constant 0.000000e+00 : f32
    %115 = vector.broadcast %cst_45 : f32 to vector<8x16xf32>
    %116 = arith.maximumf %114, %115 : vector<8x16xf32>
    %117 = math.sqrt %116 : vector<8x16xf32>
    %118 = arith.subf %108, %117 : vector<8x16xf32>
    %119 = arith.mulf %118, %118 : vector<8x16xf32>
    %120 = vector.shape_cast %119 : vector<8x16xf32> to vector<1x8x16xf32>
    %cst_46 = arith.constant dense<0.000000e+00> : vector<1xf32>
    %121 = vector.multi_reduction <add>, %120, %cst_46 [1, 2] : vector<1x8x16xf32> to vector<1xf32>
    %122 = vector.shape_cast %121 : vector<1xf32> to vector<1x1x1xf32>
    %123 = vector.extract %122[0, 0, 0] : f32 from vector<1x1x1xf32>
    %cst_47 = arith.constant 1.280000e+02 : f32
    %124 = arith.divf %123, %cst_47 : f32
    %125 = tpu.iota {dimensions = array<i32: 1>} : vector<1x128xi32>
    %c0_i32 = arith.constant 0 : i32
    %126 = vector.broadcast %c0_i32 : i32 to vector<1x128xi32>
    %127 = arith.cmpi eq, %125, %126 : vector<1x128xi32>
    %c1_i32 = arith.constant 1 : i32
    %128 = vector.broadcast %c1_i32 : i32 to vector<1x128xi32>
    %129 = arith.cmpi eq, %125, %128 : vector<1x128xi32>
    %c2_i32 = arith.constant 2 : i32
    %130 = vector.broadcast %c2_i32 : i32 to vector<1x128xi32>
    %131 = arith.cmpi eq, %125, %130 : vector<1x128xi32>
    %cst_48 = arith.constant 0.000000e+00 : f32
    %132 = vector.broadcast %124 : f32 to vector<1x128xf32>
    %133 = vector.broadcast %cst_48 : f32 to vector<1x128xf32>
    %134 = arith.select %131, %132, %133 : vector<1x128xi1>, vector<1x128xf32>
    %135 = vector.broadcast %99 : f32 to vector<1x128xf32>
    %136 = arith.select %129, %135, %134 : vector<1x128xi1>, vector<1x128xf32>
    %137 = vector.broadcast %74 : f32 to vector<1x128xf32>
    %138 = arith.select %127, %137, %136 : vector<1x128xi1>, vector<1x128xf32>
    %c0_49 = arith.constant 0 : index
    %c0_50 = arith.constant 0 : index
    %139 = vector.load %arg2[%c0_49, %c0_50] : memref<1x128xf32, #tpu.memory_space<vmem>>, vector<1x128xf32>
    tpu.vector_store %arg2[%c0_49, %c0_50], %138 {strides = array<i32>} : memref<1x128xf32, #tpu.memory_space<vmem>>, vector<1x128xf32>,
    return
  }
}

</mosaic_0001>

<llo_original>
// kernel: tpu_custom_call.1
$region0: #{tpu_custom_call.1}
  #allocation0 [shape = 'u32[]', space=smem, size = 0x4, offset = 0x4, fixed_abs, tag = 'smem constant byte address 0x4 - core index']
  #allocation1 [shape = 'u32[144,128]{1,0:T(1,128)}', space=vmem, size = 0x12000, scoped, tag = 'internal scratch']
  %s0 = inlined_call_operand.hbm [shape: f32[8,16,32], index: 0, kind: input, shape index: {}]
  %s1 = inlined_call_operand.hbm [shape: f32[8,16,32], index: 1, kind: input, shape index: {}]
  %s2 = inlined_call_operand.hbm [shape: f32[1,128], index: 2, kind: output, shape index: {}]
  %s3 = sld [smem:[#allocation0]]
  $region26: #{tpu_custom_call.1} parent=0
    _
  %s5 = ssub.s32 1, %s3
  %s6 = scalar_select 0, %s5, %s3
  $region1: #{tpu_custom_call.1} parent=0
    #allocation2 [shape = 'u8[65536]{0}', space=vmem, size = 0x10000, scoped, tag = 'input window, operand 0, single buffered']
    #allocation3 [shape = 's32[1]{0}', space=sflag, size = 0x4, scoped, tag = 'scoped memory for tpu_custom_call.1']
    #allocation4 [shape = 's32[1]{0}', space=sflag, size = 0x4, scoped, tag = 'scoped memory for tpu_custom_call.1']
    #allocation5 [shape = 'u8[65536]{0}', space=vmem, size = 0x10000, scoped, tag = 'input window, operand 1, single buffered']
    #allocation6 [shape = 's32[1]{0}', space=sflag, size = 0x4, scoped, tag = 'scoped memory for tpu_custom_call.1']
    #allocation7 [shape = 'u8[512]{0}', space=vmem, size = 0x400, scoped, tag = 'output window, operand 0, single buffered']
    %7 = vsyncpa [#allocation3], 0
    %8 = vsyncpa [#allocation6], 0
    %9 = vsyncpa [#allocation4], 0
    // Predicated region
    $region2: #{tpu_custom_call.1} parent=1 // pred_check
      _
    $region3: #{tpu_custom_call.1} parent=1 // pred_check_branch
      %11 = sbr.rel (0) target = $region5
    $region4: #{tpu_custom_call.1} parent=1 // pred_region
      %s13 = ssub.s32 2048, 2048
      %14 = vsyncadd [#allocation3], %s13
      %s15 = sshll.u32 [#allocation2], 4
      %s16 = int_to_ptr.vmem [resolvable:$true] %s15
      %21 = dma.hbm_to_vmem [thread:$0]  %s0, 2048, %s16, [#allocation3], 128, 128, 8
    $region5: #{tpu_custom_call.1} parent=1 // pred_fallthru
      _
    // Predicated region
    $region6: #{tpu_custom_call.1} parent=1 // pred_check
      _
    $region7: #{tpu_custom_call.1} parent=1 // pred_check_branch
      %23 = sbr.rel (0) target = $region9
    $region8: #{tpu_custom_call.1} parent=1 // pred_region
      %s25 = ssub.s32 2048, 2048
      %26 = vsyncadd [#allocation6], %s25
      %s27 = sshll.u32 [#allocation5], 4
      %s28 = int_to_ptr.vmem [resolvable:$true] %s27
      %33 = dma.hbm_to_vmem [thread:$0]  %s1, 2048, %s28, [#allocation6], 128, 128, 8
    $region9: #{tpu_custom_call.1} parent=1 // pred_fallthru
      _
    // Predicated region
    $region10: #{tpu_custom_call.1} parent=1 // pred_check
      _
    $region11: #{tpu_custom_call.1} parent=1 // pred_check_branch
      %35 = sbr.rel (0) target = $region13
    $region12: #{tpu_custom_call.1} parent=1 // pred_region
      %36 = dma.done [#allocation3], 2048
    $region13: #{tpu_custom_call.1} parent=1 // pred_fallthru
      _
    // Predicated region
    $region14: #{tpu_custom_call.1} parent=1 // pred_check
      _
    $region15: #{tpu_custom_call.1} parent=1 // pred_check_branch
      %38 = sbr.rel (0) target = $region17
    $region16: #{tpu_custom_call.1} parent=1 // pred_region
      %39 = dma.done [#allocation6], 2048
    $region17: #{tpu_custom_call.1} parent=1 // pred_fallthru
      _
    %v40 = vld [vmem:[#allocation2] sm:$0xff]
    %v41 = vld [vmem:[#allocation2 + $0x8] sm:$0xff]
    %v42 = vld [vmem:[#allocation2 + $0x10] sm:$0xff]
    %v43 = vld [vmem:[#allocation2 + $0x18] sm:$0xff]
    %v44 = vld [vmem:[#allocation2 + $0x20] sm:$0xff]
    %v45 = vld [vmem:[#allocation2 + $0x28] sm:$0xff]
    %v46 = vld [vmem:[#allocation2 + $0x30] sm:$0xff]
    %v47 = vld [vmem:[#allocation2 + $0x38] sm:$0xff]
    %v48 = vld [vmem:[#allocation2 + $0x40] sm:$0xff]
    %v49 = vld [vmem:[#allocation2 + $0x48] sm:$0xff]
    %v50 = vld [vmem:[#allocation2 + $0x50] sm:$0xff]
    %v51 = vld [vmem:[#allocation2 + $0x58] sm:$0xff]
    %v52 = vld [vmem:[#allocation2 + $0x60] sm:$0xff]
    %v53 = vld [vmem:[#allocation2 + $0x68] sm:$0xff]
    %v54 = vld [vmem:[#allocation2 + $0x70] sm:$0xff]
    %v55 = vld [vmem:[#allocation2 + $0x78] sm:$0xff]
    %v56 = vld [vmem:[#allocation5] sm:$0xff]
    %v57 = vld [vmem:[#allocation5 + $0x8] sm:$0xff]
    %v58 = vld [vmem:[#allocation5 + $0x10] sm:$0xff]
    %v59 = vld [vmem:[#allocation5 + $0x18] sm:$0xff]
    %v60 = vld [vmem:[#allocation5 + $0x20] sm:$0xff]
    %v61 = vld [vmem:[#allocation5 + $0x28] sm:$0xff]
    %v62 = vld [vmem:[#allocation5 + $0x30] sm:$0xff]
    %v63 = vld [vmem:[#allocation5 + $0x38] sm:$0xff]
    %v64 = vld [vmem:[#allocation5 + $0x40] sm:$0xff]
    %v65 = vld [vmem:[#allocation5 + $0x48] sm:$0xff]
    %v66 = vld [vmem:[#allocation5 + $0x50] sm:$0xff]
    %v67 = vld [vmem:[#allocation5 + $0x58] sm:$0xff]
    %v68 = vld [vmem:[#allocation5 + $0x60] sm:$0xff]
    %v69 = vld [vmem:[#allocation5 + $0x68] sm:$0xff]
    %v70 = vld [vmem:[#allocation5 + $0x70] sm:$0xff]
    %v71 = vld [vmem:[#allocation5 + $0x78] sm:$0xff]
    %vm72 = vcmask 261120
    %v73 = vsel %vm72, %v40, 0.0
    %74 = vadd.xlane.f32.xlu0 %v73
    %v75 = vpop.xlane.xlu0 %74
    %v76 = vsel %vm72, %v41, 0.0
    %77 = vadd.xlane.f32.xlu0 %v76
    %v78 = vpop.xlane.xlu0 %77
    %v79 = vsel %vm72, %v42, 0.0
    %80 = vadd.xlane.f32.xlu0 %v79
    %v81 = vpop.xlane.xlu0 %80
    %v82 = vsel %vm72, %v43, 0.0
    %83 = vadd.xlane.f32.xlu0 %v82
    %v84 = vpop.xlane.xlu0 %83
    %v85 = vsel %vm72, %v44, 0.0
    %86 = vadd.xlane.f32.xlu0 %v85
    %v87 = vpop.xlane.xlu0 %86
    %v88 = vsel %vm72, %v45, 0.0
    %89 = vadd.xlane.f32.xlu0 %v88
    %v90 = vpop.xlane.xlu0 %89
    %v91 = vsel %vm72, %v46, 0.0
    %92 = vadd.xlane.f32.xlu0 %v91
    %v93 = vpop.xlane.xlu0 %92
    %v94 = vsel %vm72, %v47, 0.0
    %95 = vadd.xlane.f32.xlu0 %v94
    %v96 = vpop.xlane.xlu0 %95
    %v97 = vsel %vm72, %v48, 0.0
    %98 = vadd.xlane.f32.xlu0 %v97
    %v99 = vpop.xlane.xlu0 %98
    %v100 = vsel %vm72, %v49, 0.0
    %101 = vadd.xlane.f32.xlu0 %v100
    %v102 = vpop.xlane.xlu0 %101
    %v103 = vsel %vm72, %v50, 0.0
    %104 = vadd.xlane.f32.xlu0 %v103
    %v105 = vpop.xlane.xlu0 %104
    %v106 = vsel %vm72, %v51, 0.0
    %107 = vadd.xlane.f32.xlu0 %v106
    %v108 = vpop.xlane.xlu0 %107
    %v109 = vsel %vm72, %v52, 0.0
    %110 = vadd.xlane.f32.xlu0 %v109
    %v111 = vpop.xlane.xlu0 %110
    %v112 = vsel %vm72, %v53, 0.0
    %113 = vadd.xlane.f32.xlu0 %v112
    %v114 = vpop.xlane.xlu0 %113
    %v115 = vsel %vm72, %v54, 0.0
    %116 = vadd.xlane.f32.xlu0 %v115
    %v117 = vpop.xlane.xlu0 %116
    %v118 = vsel %vm72, %v55, 0.0
    %119 = vadd.xlane.f32.xlu0 %v118
    %v120 = vpop.xlane.xlu0 %119
    %v121 = vadd.f32 %v73, %v76
    %v122 = vrot.slane %v121, 4
    %v123 = vadd.f32 %v121, %v122
    %v124 = vrot.slane %v123, 2
    %v125 = vadd.f32 %v123, %v124
    %v126 = vrot.slane %v125, 1
    %v127 = vadd.f32 %v125, %v126
    %v128 = vadd.f32 %v79, %v82
    %v129 = vrot.slane %v128, 4
    %v130 = vadd.f32 %v128, %v129
    %v131 = vrot.slane %v130, 2
    %v132 = vadd.f32 %v130, %v131
    %v133 = vrot.slane %v132, 1
    %v134 = vadd.f32 %v132, %v133
    %v135 = vadd.f32 %v85, %v88
    %v136 = vrot.slane %v135, 4
    %v137 = vadd.f32 %v135, %v136
    %v138 = vrot.slane %v137, 2
    %v139 = vadd.f32 %v137, %v138
    %v140 = vrot.slane %v139, 1
    %v141 = vadd.f32 %v139, %v140
    %v142 = vadd.f32 %v91, %v94
    %v143 = vrot.slane %v142, 4
    %v144 = vadd.f32 %v142, %v143
    %v145 = vrot.slane %v144, 2
    %v146 = vadd.f32 %v144, %v145
    %v147 = vrot.slane %v146, 1
    %v148 = vadd.f32 %v146, %v147
    %v149 = vadd.f32 %v97, %v100
    %v150 = vrot.slane %v149, 4
    %v151 = vadd.f32 %v149, %v150
    %v152 = vrot.slane %v151, 2
    %v153 = vadd.f32 %v151, %v152
    %v154 = vrot.slane %v153, 1
    %v155 = vadd.f32 %v153, %v154
    %v156 = vadd.f32 %v103, %v106
    %v157 = vrot.slane %v156, 4
    %v158 = vadd.f32 %v156, %v157
    %v159 = vrot.slane %v158, 2
    %v160 = vadd.f32 %v158, %v159
    %v161 = vrot.slane %v160, 1
    %v162 = vadd.f32 %v160, %v161
    %v163 = vadd.f32 %v109, %v112
    %v164 = vrot.slane %v163, 4
    %v165 = vadd.f32 %v163, %v164
    %v166 = vrot.slane %v165, 2
    %v167 = vadd.f32 %v165, %v166
    %v168 = vrot.slane %v167, 1
    %v169 = vadd.f32 %v167, %v168
    %v170 = vadd.f32 %v115, %v118
    %v171 = vrot.slane %v170, 4
    %v172 = vadd.f32 %v170, %v171
    %v173 = vrot.slane %v172, 2
    %v174 = vadd.f32 %v172, %v173
    %v175 = vrot.slane %v174, 1
    %v176 = vadd.f32 %v174, %v175
    %v193 = vlaneseq
    %v194 = vand.u32 %v193, 127
    %v195 = vlaneseq
    %v196 = vshrl.u32 %v195, 7
    %v197 = vsub.s32 %v194, %v196
    %v198 = vrot.slane %v75, %v197
    %v199 = vadd.s32 %v194, 4294967288
    %v200 = vlaneseq
    %v201 = vshrl.u32 %v200, 7
    %v202 = vsub.s32 %v199, %v201
    %v203 = vrot.slane %v78, %v202
    %vm204 = vcmask 130112
    %v205 = vsel %vm204, %v203, %v198
    %v206 = vlaneseq
    %v207 = vshrl.u32 %v206, 7
    %v208 = vsub.s32 %v194, %v207
    %v209 = vrot.slane %v81, %v208
    %v210 = vlaneseq
    %v211 = vshrl.u32 %v210, 7
    %v212 = vsub.s32 %v199, %v211
    %v213 = vrot.slane %v84, %v212
    %v214 = vsel %vm204, %v213, %v209
    %v215 = vlaneseq
    %v216 = vshrl.u32 %v215, 7
    %v217 = vsub.s32 %v194, %v216
    %v218 = vrot.slane %v87, %v217
    %v219 = vlaneseq
    %v220 = vshrl.u32 %v219, 7
    %v221 = vsub.s32 %v199, %v220
    %v222 = vrot.slane %v90, %v221
    %v223 = vsel %vm204, %v222, %v218
    %v224 = vlaneseq
    %v225 = vshrl.u32 %v224, 7
    %v226 = vsub.s32 %v194, %v225
    %v227 = vrot.slane %v93, %v226
    %v228 = vlaneseq
    %v229 = vshrl.u32 %v228, 7
    %v230 = vsub.s32 %v199, %v229
    %v231 = vrot.slane %v96, %v230
    %v232 = vsel %vm204, %v231, %v227
    %v233 = vlaneseq
    %v234 = vshrl.u32 %v233, 7
    %v235 = vsub.s32 %v194, %v234
    %v236 = vrot.slane %v99, %v235
    %v237 = vlaneseq
    %v238 = vshrl.u32 %v237, 7
    %v239 = vsub.s32 %v199, %v238
    %v240 = vrot.slane %v102, %v239
    %v241 = vsel %vm204, %v240, %v236
    %v242 = vlaneseq
    %v243 = vshrl.u32 %v242, 7
    %v244 = vsub.s32 %v194, %v243
    %v245 = vrot.slane %v105, %v244
    %v246 = vlaneseq
    %v247 = vshrl.u32 %v246, 7
    %v248 = vsub.s32 %v199, %v247
    %v249 = vrot.slane %v108, %v248
    %v250 = vsel %vm204, %v249, %v245
    %v251 = vlaneseq
    %v252 = vshrl.u32 %v251, 7
    %v253 = vsub.s32 %v194, %v252
    %v254 = vrot.slane %v111, %v253
    %v255 = vlaneseq
    %v256 = vshrl.u32 %v255, 7
    %v257 = vsub.s32 %v199, %v256
    %v258 = vrot.slane %v114, %v257
    %v259 = vsel %vm204, %v258, %v254
    %v260 = vlaneseq
    %v261 = vshrl.u32 %v260, 7
    %v262 = vsub.s32 %v194, %v261
    %v263 = vrot.slane %v117, %v262
    %v264 = vlaneseq
    %v265 = vshrl.u32 %v264, 7
    %v266 = vsub.s32 %v199, %v265
    %v267 = vrot.slane %v120, %v266
    %v268 = vsel %vm204, %v267, %v263
    %vm269 = vcmask 1041409
    %v270 = vsel %vm269, %v214, %v205
    %vm271 = vcmask 1042434
    %v272 = vsel %vm271, %v223, %v270
    %vm273 = vcmask 1043459
    %v274 = vsel %vm273, %v232, %v272
    %vm275 = vcmask 1044484
    %v276 = vsel %vm275, %v241, %v274
    %vm277 = vcmask 1045509
    %v278 = vsel %vm277, %v250, %v276
    %vm279 = vcmask 1046534
    %v280 = vsel %vm279, %v259, %v278
    %vm281 = vcmask 1047559
    %v282 = vsel %vm281, %v268, %v280
    %vm284 = vcmask 130048
    %v285 = vsel %vm284, %v282, 0.0
    %286 = vadd.xlane.f32.xlu0 %v285
    %v287 = vpop.xlane.xlu0 %286
    %v288 = vmul.f32 %v287, 0.001953125
    %v290 = vlaneseq
    %v291 = vshrl.u32 %v290, 7
    %v292 = vsub.s32 0, %v291
    %v293 = vrot.slane %v288, %v292
    %v294 = vlaneseq
    %v295 = vshrl.u32 %v294, 7
    %v296 = vsub.s32 1, %v295
    %v297 = vrot.slane %v288, %v296
    %v298 = vlaneseq
    %v299 = vshrl.u32 %v298, 7
    %v300 = vsub.s32 2, %v299
    %v301 = vrot.slane %v288, %v300
    %v302 = vlaneseq
    %v303 = vshrl.u32 %v302, 7
    %v304 = vsub.s32 3, %v303
    %v305 = vrot.slane %v288, %v304
    %v306 = vlaneseq
    %v307 = vshrl.u32 %v306, 7
    %v308 = vsub.s32 4, %v307
    %v309 = vrot.slane %v288, %v308
    %v310 = vlaneseq
    %v311 = vshrl.u32 %v310, 7
    %v312 = vsub.s32 5, %v311
    %v313 = vrot.slane %v288, %v312
    %v314 = vlaneseq
    %v315 = vshrl.u32 %v314, 7
    %v316 = vsub.s32 6, %v315
    %v317 = vrot.slane %v288, %v316
    %v318 = vlaneseq
    %v319 = vshrl.u32 %v318, 7
    %v320 = vsub.s32 7, %v319
    %v321 = vrot.slane %v288, %v320
    %v330 = vsub.f32 %v40, %v293
    %v331 = vsub.f32 %v41, %v293
    %v332 = vsub.f32 %v42, %v297
    %v333 = vsub.f32 %v43, %v297
    %v334 = vsub.f32 %v44, %v301
    %v335 = vsub.f32 %v45, %v301
    %v336 = vsub.f32 %v46, %v305
    %v337 = vsub.f32 %v47, %v305
    %v338 = vsub.f32 %v48, %v309
    %v339 = vsub.f32 %v49, %v309
    %v340 = vsub.f32 %v50, %v313
    %v341 = vsub.f32 %v51, %v313
    %v342 = vsub.f32 %v52, %v317
    %v343 = vsub.f32 %v53, %v317
    %v344 = vsub.f32 %v54, %v321
    %v345 = vsub.f32 %v55, %v321
    %v346 = vmul.f32 %v330, %v330
    %v347 = vmul.f32 %v331, %v331
    %v348 = vmul.f32 %v332, %v332
    %v349 = vmul.f32 %v333, %v333
    %v350 = vmul.f32 %v334, %v334
    %v351 = vmul.f32 %v335, %v335
    %v352 = vmul.f32 %v336, %v336
    %v353 = vmul.f32 %v337, %v337
    %v354 = vmul.f32 %v338, %v338
    %v355 = vmul.f32 %v339, %v339
    %v356 = vmul.f32 %v340, %v340
    %v357 = vmul.f32 %v341, %v341
    %v358 = vmul.f32 %v342, %v342
    %v359 = vmul.f32 %v343, %v343
    %v360 = vmul.f32 %v344, %v344
    %v361 = vmul.f32 %v345, %v345
    %v362 = vsel %vm72, %v346, 0.0
    %363 = vadd.xlane.f32.xlu0 %v362
    %v364 = vpop.xlane.xlu0 %363
    %v365 = vsel %vm72, %v347, 0.0
    %366 = vadd.xlane.f32.xlu0 %v365
    %v367 = vpop.xlane.xlu0 %366
    %v368 = vsel %vm72, %v348, 0.0
    %369 = vadd.xlane.f32.xlu0 %v368
    %v370 = vpop.xlane.xlu0 %369
    %v371 = vsel %vm72, %v349, 0.0
    %372 = vadd.xlane.f32.xlu0 %v371
    %v373 = vpop.xlane.xlu0 %372
    %v374 = vsel %vm72, %v350, 0.0
    %375 = vadd.xlane.f32.xlu0 %v374
    %v376 = vpop.xlane.xlu0 %375
    %v377 = vsel %vm72, %v351, 0.0
    %378 = vadd.xlane.f32.xlu0 %v377
    %v379 = vpop.xlane.xlu0 %378
    %v380 = vsel %vm72, %v352, 0.0
    %381 = vadd.xlane.f32.xlu0 %v380
    %v382 = vpop.xlane.xlu0 %381
    %v383 = vsel %vm72, %v353, 0.0
    %384 = vadd.xlane.f32.xlu0 %v383
    %v385 = vpop.xlane.xlu0 %384
    %v386 = vsel %vm72, %v354, 0.0
    %387 = vadd.xlane.f32.xlu0 %v386
    %v388 = vpop.xlane.xlu0 %387
    %v389 = vsel %vm72, %v355, 0.0
    %390 = vadd.xlane.f32.xlu0 %v389
    %v391 = vpop.xlane.xlu0 %390
    %v392 = vsel %vm72, %v356, 0.0
    %393 = vadd.xlane.f32.xlu0 %v392
    %v394 = vpop.xlane.xlu0 %393
    %v395 = vsel %vm72, %v357, 0.0
    %396 = vadd.xlane.f32.xlu0 %v395
    %v397 = vpop.xlane.xlu0 %396
    %v398 = vsel %vm72, %v358, 0.0
    %399 = vadd.xlane.f32.xlu0 %v398
    %v400 = vpop.xlane.xlu0 %399
    %v401 = vsel %vm72, %v359, 0.0
    %402 = vadd.xlane.f32.xlu0 %v401
    %v403 = vpop.xlane.xlu0 %402
    %v404 = vsel %vm72, %v360, 0.0
    %405 = vadd.xlane.f32.xlu0 %v404
    %v406 = vpop.xlane.xlu0 %405
    %v407 = vsel %vm72, %v361, 0.0
    %408 = vadd.xlane.f32.xlu0 %v407
    %v409 = vpop.xlane.xlu0 %408
    %v410 = vadd.f32 %v362, %v365
    %v411 = vrot.slane %v410, 4
    %v412 = vadd.f32 %v410, %v411
    %v413 = vrot.slane %v412, 2
    %v414 = vadd.f32 %v412, %v413
    %v415 = vrot.slane %v414, 1
    %v416 = vadd.f32 %v414, %v415
    %v417 = vadd.f32 %v368, %v371
    %v418 = vrot.slane %v417, 4
    %v419 = vadd.f32 %v417, %v418
    %v420 = vrot.slane %v419, 2
    %v421 = vadd.f32 %v419, %v420
    %v422 = vrot.slane %v421, 1
    %v423 = vadd.f32 %v421, %v422
    %v424 = vadd.f32 %v374, %v377
    %v425 = vrot.slane %v424, 4
    %v426 = vadd.f32 %v424, %v425
    %v427 = vrot.slane %v426, 2
    %v428 = vadd.f32 %v426, %v427
    %v429 = vrot.slane %v428, 1
    %v430 = vadd.f32 %v428, %v429
    %v431 = vadd.f32 %v380, %v383
    %v432 = vrot.slane %v431, 4
    %v433 = vadd.f32 %v431, %v432
    %v434 = vrot.slane %v433, 2
    %v435 = vadd.f32 %v433, %v434
    %v436 = vrot.slane %v435, 1
    %v437 = vadd.f32 %v435, %v436
    %v438 = vadd.f32 %v386, %v389
    %v439 = vrot.slane %v438, 4
    %v440 = vadd.f32 %v438, %v439
    %v441 = vrot.slane %v440, 2
    %v442 = vadd.f32 %v440, %v441
    %v443 = vrot.slane %v442, 1
    %v444 = vadd.f32 %v442, %v443
    %v445 = vadd.f32 %v392, %v395
    %v446 = vrot.slane %v445, 4
    %v447 = vadd.f32 %v445, %v446
    %v448 = vrot.slane %v447, 2
    %v449 = vadd.f32 %v447, %v448
    %v450 = vrot.slane %v449, 1
    %v451 = vadd.f32 %v449, %v450
    %v452 = vadd.f32 %v398, %v401
    %v453 = vrot.slane %v452, 4
    %v454 = vadd.f32 %v452, %v453
    %v455 = vrot.slane %v454, 2
    %v456 = vadd.f32 %v454, %v455
    %v457 = vrot.slane %v456, 1
    %v458 = vadd.f32 %v456, %v457
    %v459 = vadd.f32 %v404, %v407
    %v460 = vrot.slane %v459, 4
    %v461 = vadd.f32 %v459, %v460
    %v462 = vrot.slane %v461, 2
    %v463 = vadd.f32 %v461, %v462
    %v464 = vrot.slane %v463, 1
    %v465 = vadd.f32 %v463, %v464
    %v466 = vmul.f32 %v288, 32.0
    %v468 = vlaneseq
    %v469 = vshrl.u32 %v468, 7
    %v470 = vsub.s32 0, %v469
    %v471 = vrot.slane %v466, %v470
    %v472 = vlaneseq
    %v473 = vshrl.u32 %v472, 7
    %v474 = vsub.s32 1, %v473
    %v475 = vrot.slane %v466, %v474
    %v476 = vlaneseq
    %v477 = vshrl.u32 %v476, 7
    %v478 = vsub.s32 2, %v477
    %v479 = vrot.slane %v466, %v478
    %v480 = vlaneseq
    %v481 = vshrl.u32 %v480, 7
    %v482 = vsub.s32 3, %v481
    %v483 = vrot.slane %v466, %v482
    %v484 = vlaneseq
    %v485 = vshrl.u32 %v484, 7
    %v486 = vsub.s32 4, %v485
    %v487 = vrot.slane %v466, %v486
    %v488 = vlaneseq
    %v489 = vshrl.u32 %v488, 7
    %v490 = vsub.s32 5, %v489
    %v491 = vrot.slane %v466, %v490
    %v492 = vlaneseq
    %v493 = vshrl.u32 %v492, 7
    %v494 = vsub.s32 6, %v493
    %v495 = vrot.slane %v466, %v494
    %v496 = vlaneseq
    %v497 = vshrl.u32 %v496, 7
    %v498 = vsub.s32 7, %v497
    %v499 = vrot.slane %v466, %v498
    %v508 = vsub.f32 %v75, %v471
    %v509 = vsub.f32 %v78, %v471
    %v510 = vsub.f32 %v81, %v475
    %v511 = vsub.f32 %v84, %v475
    %v512 = vsub.f32 %v87, %v479
    %v513 = vsub.f32 %v90, %v479
    %v514 = vsub.f32 %v93, %v483
    %v515 = vsub.f32 %v96, %v483
    %v516 = vsub.f32 %v99, %v487
    %v517 = vsub.f32 %v102, %v487
    %v518 = vsub.f32 %v105, %v491
    %v519 = vsub.f32 %v108, %v491
    %v520 = vsub.f32 %v111, %v495
    %v521 = vsub.f32 %v114, %v495
    %v522 = vsub.f32 %v117, %v499
    %v523 = vsub.f32 %v120, %v499
    %v524 = vmul.f32 %v288, 16.0
    %v526 = vrot.slane %v524, 1
    %v527 = vrot.slane %v524, 2
    %v528 = vrot.slane %v524, 3
    %v529 = vrot.slane %v524, 4
    %v530 = vrot.slane %v524, 5
    %v531 = vrot.slane %v524, 6
    %v532 = vrot.slane %v524, 7
    %v541 = vsub.f32 %v127, %v524
    %v542 = vsub.f32 %v134, %v526
    %v543 = vsub.f32 %v141, %v527
    %v544 = vsub.f32 %v148, %v528
    %v545 = vsub.f32 %v155, %v529
    %v546 = vsub.f32 %v162, %v530
    %v547 = vsub.f32 %v169, %v531
    %v548 = vsub.f32 %v176, %v532
    %565 = vset.pattern.permute.xlu0 0
    %566 = vperm.xlu0 %565, %v508
    %v567 = vpop.permute.xlu0 %566
    %568 = vset.pattern.permute.xlu0 0
    %569 = vperm.xlu0 %568, %v509
    %v570 = vpop.permute.xlu0 %569
    %571 = vset.pattern.permute.xlu0 0
    %572 = vperm.xlu0 %571, %v510
    %v573 = vpop.permute.xlu0 %572
    %574 = vset.pattern.permute.xlu0 0
    %575 = vperm.xlu0 %574, %v511
    %v576 = vpop.permute.xlu0 %575
    %577 = vset.pattern.permute.xlu0 0
    %578 = vperm.xlu0 %577, %v512
    %v579 = vpop.permute.xlu0 %578
    %580 = vset.pattern.permute.xlu0 0
    %581 = vperm.xlu0 %580, %v513
    %v582 = vpop.permute.xlu0 %581
    %583 = vset.pattern.permute.xlu0 0
    %584 = vperm.xlu0 %583, %v514
    %v585 = vpop.permute.xlu0 %584
    %586 = vset.pattern.permute.xlu0 0
    %587 = vperm.xlu0 %586, %v515
    %v588 = vpop.permute.xlu0 %587
    %589 = vset.pattern.permute.xlu0 0
    %590 = vperm.xlu0 %589, %v516
    %v591 = vpop.permute.xlu0 %590
    %592 = vset.pattern.permute.xlu0 0
    %593 = vperm.xlu0 %592, %v517
    %v594 = vpop.permute.xlu0 %593
    %595 = vset.pattern.permute.xlu0 0
    %596 = vperm.xlu0 %595, %v518
    %v597 = vpop.permute.xlu0 %596
    %598 = vset.pattern.permute.xlu0 0
    %599 = vperm.xlu0 %598, %v519
    %v600 = vpop.permute.xlu0 %599
    %601 = vset.pattern.permute.xlu0 0
    %602 = vperm.xlu0 %601, %v520
    %v603 = vpop.permute.xlu0 %602
    %604 = vset.pattern.permute.xlu0 0
    %605 = vperm.xlu0 %604, %v521
    %v606 = vpop.permute.xlu0 %605
    %607 = vset.pattern.permute.xlu0 0
    %608 = vperm.xlu0 %607, %v522
    %v609 = vpop.permute.xlu0 %608
    %610 = vset.pattern.permute.xlu0 0
    %611 = vperm.xlu0 %610, %v523
    %v612 = vpop.permute.xlu0 %611
    %v613 = vlaneseq
    %v614 = vshrl.u32 %v613, 7
    %v615 = vsub.s32 %v194, %v614
    %v616 = vrot.slane %v567, %v615
    %v617 = vlaneseq
    %v618 = vshrl.u32 %v617, 7
    %v619 = vsub.s32 %v199, %v618
    %v620 = vrot.slane %v570, %v619
    %v621 = vsel %vm204, %v620, %v616
    %v622 = vlaneseq
    %v623 = vshrl.u32 %v622, 7
    %v624 = vsub.s32 %v194, %v623
    %v625 = vrot.slane %v573, %v624
    %v626 = vlaneseq
    %v627 = vshrl.u32 %v626, 7
    %v628 = vsub.s32 %v199, %v627
    %v629 = vrot.slane %v576, %v628
    %v630 = vsel %vm204, %v629, %v625
    %v631 = vlaneseq
    %v632 = vshrl.u32 %v631, 7
    %v633 = vsub.s32 %v194, %v632
    %v634 = vrot.slane %v579, %v633
    %v635 = vlaneseq
    %v636 = vshrl.u32 %v635, 7
    %v637 = vsub.s32 %v199, %v636
    %v638 = vrot.slane %v582, %v637
    %v639 = vsel %vm204, %v638, %v634
    %v640 = vlaneseq
    %v641 = vshrl.u32 %v640, 7
    %v642 = vsub.s32 %v194, %v641
    %v643 = vrot.slane %v585, %v642
    %v644 = vlaneseq
    %v645 = vshrl.u32 %v644, 7
    %v646 = vsub.s32 %v199, %v645
    %v647 = vrot.slane %v588, %v646
    %v648 = vsel %vm204, %v647, %v643
    %v649 = vlaneseq
    %v650 = vshrl.u32 %v649, 7
    %v651 = vsub.s32 %v194, %v650
    %v652 = vrot.slane %v591, %v651
    %v653 = vlaneseq
    %v654 = vshrl.u32 %v653, 7
    %v655 = vsub.s32 %v199, %v654
    %v656 = vrot.slane %v594, %v655
    %v657 = vsel %vm204, %v656, %v652
    %v658 = vlaneseq
    %v659 = vshrl.u32 %v658, 7
    %v660 = vsub.s32 %v194, %v659
    %v661 = vrot.slane %v597, %v660
    %v662 = vlaneseq
    %v663 = vshrl.u32 %v662, 7
    %v664 = vsub.s32 %v199, %v663
    %v665 = vrot.slane %v600, %v664
    %v666 = vsel %vm204, %v665, %v661
    %v667 = vlaneseq
    %v668 = vshrl.u32 %v667, 7
    %v669 = vsub.s32 %v194, %v668
    %v670 = vrot.slane %v603, %v669
    %v671 = vlaneseq
    %v672 = vshrl.u32 %v671, 7
    %v673 = vsub.s32 %v199, %v672
    %v674 = vrot.slane %v606, %v673
    %v675 = vsel %vm204, %v674, %v670
    %v676 = vlaneseq
    %v677 = vshrl.u32 %v676, 7
    %v678 = vsub.s32 %v194, %v677
    %v679 = vrot.slane %v609, %v678
    %v680 = vlaneseq
    %v681 = vshrl.u32 %v680, 7
    %v682 = vsub.s32 %v199, %v681
    %v683 = vrot.slane %v612, %v682
    %v684 = vsel %vm204, %v683, %v679
    %v685 = vsel %vm269, %v630, %v621
    %v686 = vsel %vm271, %v639, %v685
    %v687 = vsel %vm273, %v648, %v686
    %v688 = vsel %vm275, %v657, %v687
    %v689 = vsel %vm277, %v666, %v688
    %v690 = vsel %vm279, %v675, %v689
    %v691 = vsel %vm281, %v684, %v690
    %v693 = vsel %vm284, %v691, 0.0
    %694 = vadd.xlane.f32.xlu0 %v693
    %v695 = vpop.xlane.xlu0 %694
    %v712 = vlaneseq
    %v713 = vshrl.u32 %v712, 7
    %v714 = vsub.s32 %v194, %v713
    %v715 = vrot.slane %v364, %v714
    %v716 = vlaneseq
    %v717 = vshrl.u32 %v716, 7
    %v718 = vsub.s32 %v199, %v717
    %v719 = vrot.slane %v367, %v718
    %v720 = vsel %vm204, %v719, %v715
    %v721 = vlaneseq
    %v722 = vshrl.u32 %v721, 7
    %v723 = vsub.s32 %v194, %v722
    %v724 = vrot.slane %v370, %v723
    %v725 = vlaneseq
    %v726 = vshrl.u32 %v725, 7
    %v727 = vsub.s32 %v199, %v726
    %v728 = vrot.slane %v373, %v727
    %v729 = vsel %vm204, %v728, %v724
    %v730 = vlaneseq
    %v731 = vshrl.u32 %v730, 7
    %v732 = vsub.s32 %v194, %v731
    %v733 = vrot.slane %v376, %v732
    %v734 = vlaneseq
    %v735 = vshrl.u32 %v734, 7
    %v736 = vsub.s32 %v199, %v735
    %v737 = vrot.slane %v379, %v736
    %v738 = vsel %vm204, %v737, %v733
    %v739 = vlaneseq
    %v740 = vshrl.u32 %v739, 7
    %v741 = vsub.s32 %v194, %v740
    %v742 = vrot.slane %v382, %v741
    %v743 = vlaneseq
    %v744 = vshrl.u32 %v743, 7
    %v745 = vsub.s32 %v199, %v744
    %v746 = vrot.slane %v385, %v745
    %v747 = vsel %vm204, %v746, %v742
    %v748 = vlaneseq
    %v749 = vshrl.u32 %v748, 7
    %v750 = vsub.s32 %v194, %v749
    %v751 = vrot.slane %v388, %v750
    %v752 = vlaneseq
    %v753 = vshrl.u32 %v752, 7
    %v754 = vsub.s32 %v199, %v753
    %v755 = vrot.slane %v391, %v754
    %v756 = vsel %vm204, %v755, %v751
    %v757 = vlaneseq
    %v758 = vshrl.u32 %v757, 7
    %v759 = vsub.s32 %v194, %v758
    %v760 = vrot.slane %v394, %v759
    %v761 = vlaneseq
    %v762 = vshrl.u32 %v761, 7
    %v763 = vsub.s32 %v199, %v762
    %v764 = vrot.slane %v397, %v763
    %v765 = vsel %vm204, %v764, %v760
    %v766 = vlaneseq
    %v767 = vshrl.u32 %v766, 7
    %v768 = vsub.s32 %v194, %v767
    %v769 = vrot.slane %v400, %v768
    %v770 = vlaneseq
    %v771 = vshrl.u32 %v770, 7
    %v772 = vsub.s32 %v199, %v771
    %v773 = vrot.slane %v403, %v772
    %v774 = vsel %vm204, %v773, %v769
    %v775 = vlaneseq
    %v776 = vshrl.u32 %v775, 7
    %v777 = vsub.s32 %v194, %v776
    %v778 = vrot.slane %v406, %v777
    %v779 = vlaneseq
    %v780 = vshrl.u32 %v779, 7
    %v781 = vsub.s32 %v199, %v780
    %v782 = vrot.slane %v409, %v781
    %v783 = vsel %vm204, %v782, %v778
    %v784 = vsel %vm269, %v729, %v720
    %v785 = vsel %vm271, %v738, %v784
    %v786 = vsel %vm273, %v747, %v785
    %v787 = vsel %vm275, %v756, %v786
    %v788 = vsel %vm277, %v765, %v787
    %v789 = vsel %vm279, %v774, %v788
    %v790 = vsel %vm281, %v783, %v789
    %v792 = vsel %vm284, %v790, 0.0
    %793 = vadd.xlane.f32.xlu0 %v792
    %v794 = vpop.xlane.xlu0 %793
    %v795 = vsel %vm72, %v56, 0.0
    %796 = vadd.xlane.f32.xlu0 %v795
    %v797 = vpop.xlane.xlu0 %796
    %v798 = vsel %vm72, %v57, 0.0
    %799 = vadd.xlane.f32.xlu0 %v798
    %v800 = vpop.xlane.xlu0 %799
    %v801 = vsel %vm72, %v58, 0.0
    %802 = vadd.xlane.f32.xlu0 %v801
    %v803 = vpop.xlane.xlu0 %802
    %v804 = vsel %vm72, %v59, 0.0
    %805 = vadd.xlane.f32.xlu0 %v804
    %v806 = vpop.xlane.xlu0 %805
    %v807 = vsel %vm72, %v60, 0.0
    %808 = vadd.xlane.f32.xlu0 %v807
    %v809 = vpop.xlane.xlu0 %808
    %v810 = vsel %vm72, %v61, 0.0
    %811 = vadd.xlane.f32.xlu0 %v810
    %v812 = vpop.xlane.xlu0 %811
    %v813 = vsel %vm72, %v62, 0.0
    %814 = vadd.xlane.f32.xlu0 %v813
    %v815 = vpop.xlane.xlu0 %814
    %v816 = vsel %vm72, %v63, 0.0
    %817 = vadd.xlane.f32.xlu0 %v816
    %v818 = vpop.xlane.xlu0 %817
    %v819 = vsel %vm72, %v64, 0.0
    %820 = vadd.xlane.f32.xlu0 %v819
    %v821 = vpop.xlane.xlu0 %820
    %v822 = vsel %vm72, %v65, 0.0
    %823 = vadd.xlane.f32.xlu0 %v822
    %v824 = vpop.xlane.xlu0 %823
    %v825 = vsel %vm72, %v66, 0.0
    %826 = vadd.xlane.f32.xlu0 %v825
    %v827 = vpop.xlane.xlu0 %826
    %v828 = vsel %vm72, %v67, 0.0
    %829 = vadd.xlane.f32.xlu0 %v828
    %v830 = vpop.xlane.xlu0 %829
    %v831 = vsel %vm72, %v68, 0.0
    %832 = vadd.xlane.f32.xlu0 %v831
    %v833 = vpop.xlane.xlu0 %832
    %v834 = vsel %vm72, %v69, 0.0
    %835 = vadd.xlane.f32.xlu0 %v834
    %v836 = vpop.xlane.xlu0 %835
    %v837 = vsel %vm72, %v70, 0.0
    %838 = vadd.xlane.f32.xlu0 %v837
    %v839 = vpop.xlane.xlu0 %838
    %v840 = vsel %vm72, %v71, 0.0
    %841 = vadd.xlane.f32.xlu0 %v840
    %v842 = vpop.xlane.xlu0 %841
    %v843 = vadd.f32 %v795, %v798
    %v844 = vrot.slane %v843, 4
    %v845 = vadd.f32 %v843, %v844
    %v846 = vrot.slane %v845, 2
    %v847 = vadd.f32 %v845, %v846
    %v848 = vrot.slane %v847, 1
    %v849 = vadd.f32 %v847, %v848
    %v850 = vadd.f32 %v801, %v804
    %v851 = vrot.slane %v850, 4
    %v852 = vadd.f32 %v850, %v851
    %v853 = vrot.slane %v852, 2
    %v854 = vadd.f32 %v852, %v853
    %v855 = vrot.slane %v854, 1
    %v856 = vadd.f32 %v854, %v855
    %v857 = vadd.f32 %v807, %v810
    %v858 = vrot.slane %v857, 4
    %v859 = vadd.f32 %v857, %v858
    %v860 = vrot.slane %v859, 2
    %v861 = vadd.f32 %v859, %v860
    %v862 = vrot.slane %v861, 1
    %v863 = vadd.f32 %v861, %v862
    %v864 = vadd.f32 %v813, %v816
    %v865 = vrot.slane %v864, 4
    %v866 = vadd.f32 %v864, %v865
    %v867 = vrot.slane %v866, 2
    %v868 = vadd.f32 %v866, %v867
    %v869 = vrot.slane %v868, 1
    %v870 = vadd.f32 %v868, %v869
    %v871 = vadd.f32 %v819, %v822
    %v872 = vrot.slane %v871, 4
    %v873 = vadd.f32 %v871, %v872
    %v874 = vrot.slane %v873, 2
    %v875 = vadd.f32 %v873, %v874
    %v876 = vrot.slane %v875, 1
    %v877 = vadd.f32 %v875, %v876
    %v878 = vadd.f32 %v825, %v828
    %v879 = vrot.slane %v878, 4
    %v880 = vadd.f32 %v878, %v879
    %v881 = vrot.slane %v880, 2
    %v882 = vadd.f32 %v880, %v881
    %v883 = vrot.slane %v882, 1
    %v884 = vadd.f32 %v882, %v883
    %v885 = vadd.f32 %v831, %v834
    %v886 = vrot.slane %v885, 4
    %v887 = vadd.f32 %v885, %v886
    %v888 = vrot.slane %v887, 2
    %v889 = vadd.f32 %v887, %v888
    %v890 = vrot.slane %v889, 1
    %v891 = vadd.f32 %v889, %v890
    %v892 = vadd.f32 %v837, %v840
    %v893 = vrot.slane %v892, 4
    %v894 = vadd.f32 %v892, %v893
    %v895 = vrot.slane %v894, 2
    %v896 = vadd.f32 %v894, %v895
    %v897 = vrot.slane %v896, 1
    %v898 = vadd.f32 %v896, %v897
    %v915 = vlaneseq
    %v916 = vshrl.u32 %v915, 7
    %v917 = vsub.s32 %v194, %v916
    %v918 = vrot.slane %v797, %v917
    %v919 = vlaneseq
    %v920 = vshrl.u32 %v919, 7
    %v921 = vsub.s32 %v199, %v920
    %v922 = vrot.slane %v800, %v921
    %v923 = vsel %vm204, %v922, %v918
    %v924 = vlaneseq
    %v925 = vshrl.u32 %v924, 7
    %v926 = vsub.s32 %v194, %v925
    %v927 = vrot.slane %v803, %v926
    %v928 = vlaneseq
    %v929 = vshrl.u32 %v928, 7
    %v930 = vsub.s32 %v199, %v929
    %v931 = vrot.slane %v806, %v930
    %v932 = vsel %vm204, %v931, %v927
    %v933 = vlaneseq
    %v934 = vshrl.u32 %v933, 7
    %v935 = vsub.s32 %v194, %v934
    %v936 = vrot.slane %v809, %v935
    %v937 = vlaneseq
    %v938 = vshrl.u32 %v937, 7
    %v939 = vsub.s32 %v199, %v938
    %v940 = vrot.slane %v812, %v939
    %v941 = vsel %vm204, %v940, %v936
    %v942 = vlaneseq
    %v943 = vshrl.u32 %v942, 7
    %v944 = vsub.s32 %v194, %v943
    %v945 = vrot.slane %v815, %v944
    %v946 = vlaneseq
    %v947 = vshrl.u32 %v946, 7
    %v948 = vsub.s32 %v199, %v947
    %v949 = vrot.slane %v818, %v948
    %v950 = vsel %vm204, %v949, %v945
    %v951 = vlaneseq
    %v952 = vshrl.u32 %v951, 7
    %v953 = vsub.s32 %v194, %v952
    %v954 = vrot.slane %v821, %v953
    %v955 = vlaneseq
    %v956 = vshrl.u32 %v955, 7
    %v957 = vsub.s32 %v199, %v956
    %v958 = vrot.slane %v824, %v957
    %v959 = vsel %vm204, %v958, %v954
    %v960 = vlaneseq
    %v961 = vshrl.u32 %v960, 7
    %v962 = vsub.s32 %v194, %v961
    %v963 = vrot.slane %v827, %v962
    %v964 = vlaneseq
    %v965 = vshrl.u32 %v964, 7
    %v966 = vsub.s32 %v199, %v965
    %v967 = vrot.slane %v830, %v966
    %v968 = vsel %vm204, %v967, %v963
    %v969 = vlaneseq
    %v970 = vshrl.u32 %v969, 7
    %v971 = vsub.s32 %v194, %v970
    %v972 = vrot.slane %v833, %v971
    %v973 = vlaneseq
    %v974 = vshrl.u32 %v973, 7
    %v975 = vsub.s32 %v199, %v974
    %v976 = vrot.slane %v836, %v975
    %v977 = vsel %vm204, %v976, %v972
    %v978 = vlaneseq
    %v979 = vshrl.u32 %v978, 7
    %v980 = vsub.s32 %v194, %v979
    %v981 = vrot.slane %v839, %v980
    %v982 = vlaneseq
    %v983 = vshrl.u32 %v982, 7
    %v984 = vsub.s32 %v199, %v983
    %v985 = vrot.slane %v842, %v984
    %v986 = vsel %vm204, %v985, %v981
    %v987 = vsel %vm269, %v932, %v923
    %v988 = vsel %vm271, %v941, %v987
    %v989 = vsel %vm273, %v950, %v988
    %v990 = vsel %vm275, %v959, %v989
    %v991 = vsel %vm277, %v968, %v990
    %v992 = vsel %vm279, %v977, %v991
    %v993 = vsel %vm281, %v986, %v992
    %v995 = vsel %vm284, %v993, 0.0
    %996 = vadd.xlane.f32.xlu0 %v995
    %v997 = vpop.xlane.xlu0 %996
    %v998 = vmul.f32 %v997, 0.001953125
    %v1000 = vlaneseq
    %v1001 = vshrl.u32 %v1000, 7
    %v1002 = vsub.s32 0, %v1001
    %v1003 = vrot.slane %v998, %v1002
    %v1004 = vlaneseq
    %v1005 = vshrl.u32 %v1004, 7
    %v1006 = vsub.s32 1, %v1005
    %v1007 = vrot.slane %v998, %v1006
    %v1008 = vlaneseq
    %v1009 = vshrl.u32 %v1008, 7
    %v1010 = vsub.s32 2, %v1009
    %v1011 = vrot.slane %v998, %v1010
    %v1012 = vlaneseq
    %v1013 = vshrl.u32 %v1012, 7
    %v1014 = vsub.s32 3, %v1013
    %v1015 = vrot.slane %v998, %v1014
    %v1016 = vlaneseq
    %v1017 = vshrl.u32 %v1016, 7
    %v1018 = vsub.s32 4, %v1017
    %v1019 = vrot.slane %v998, %v1018
    %v1020 = vlaneseq
    %v1021 = vshrl.u32 %v1020, 7
    %v1022 = vsub.s32 5, %v1021
    %v1023 = vrot.slane %v998, %v1022
    %v1024 = vlaneseq
    %v1025 = vshrl.u32 %v1024, 7
    %v1026 = vsub.s32 6, %v1025
    %v1027 = vrot.slane %v998, %v1026
    %v1028 = vlaneseq
    %v1029 = vshrl.u32 %v1028, 7
    %v1030 = vsub.s32 7, %v1029
    %v1031 = vrot.slane %v998, %v1030
    %v1040 = vsub.f32 %v56, %v1003
    %v1041 = vsub.f32 %v57, %v1003
    %v1042 = vsub.f32 %v58, %v1007
    %v1043 = vsub.f32 %v59, %v1007
    %v1044 = vsub.f32 %v60, %v1011
    %v1045 = vsub.f32 %v61, %v1011
    %v1046 = vsub.f32 %v62, %v1015
    %v1047 = vsub.f32 %v63, %v1015
    %v1048 = vsub.f32 %v64, %v1019
    %v1049 = vsub.f32 %v65, %v1019
    %v1050 = vsub.f32 %v66, %v1023
    %v1051 = vsub.f32 %v67, %v1023
    %v1052 = vsub.f32 %v68, %v1027
    %v1053 = vsub.f32 %v69, %v1027
    %v1054 = vsub.f32 %v70, %v1031
    %v1055 = vsub.f32 %v71, %v1031
    %v1056 = vmul.f32 %v1040, %v1040
    %v1057 = vmul.f32 %v1041, %v1041
    %v1058 = vmul.f32 %v1042, %v1042
    %v1059 = vmul.f32 %v1043, %v1043
    %v1060 = vmul.f32 %v1044, %v1044
    %v1061 = vmul.f32 %v1045, %v1045
    %v1062 = vmul.f32 %v1046, %v1046
    %v1063 = vmul.f32 %v1047, %v1047
    %v1064 = vmul.f32 %v1048, %v1048
    %v1065 = vmul.f32 %v1049, %v1049
    %v1066 = vmul.f32 %v1050, %v1050
    %v1067 = vmul.f32 %v1051, %v1051
    %v1068 = vmul.f32 %v1052, %v1052
    %v1069 = vmul.f32 %v1053, %v1053
    %v1070 = vmul.f32 %v1054, %v1054
    %v1071 = vmul.f32 %v1055, %v1055
    %v1072 = vsel %vm72, %v1056, 0.0
    %1073 = vadd.xlane.f32.xlu0 %v1072
    %v1074 = vpop.xlane.xlu0 %1073
    %v1075 = vsel %vm72, %v1057, 0.0
    %1076 = vadd.xlane.f32.xlu0 %v1075
    %v1077 = vpop.xlane.xlu0 %1076
    %v1078 = vsel %vm72, %v1058, 0.0
    %1079 = vadd.xlane.f32.xlu0 %v1078
    %v1080 = vpop.xlane.xlu0 %1079
    %v1081 = vsel %vm72, %v1059, 0.0
    %1082 = vadd.xlane.f32.xlu0 %v1081
    %v1083 = vpop.xlane.xlu0 %1082
    %v1084 = vsel %vm72, %v1060, 0.0
    %1085 = vadd.xlane.f32.xlu0 %v1084
    %v1086 = vpop.xlane.xlu0 %1085
    %v1087 = vsel %vm72, %v1061, 0.0
    %1088 = vadd.xlane.f32.xlu0 %v1087
    %v1089 = vpop.xlane.xlu0 %1088
    %v1090 = vsel %vm72, %v1062, 0.0
    %1091 = vadd.xlane.f32.xlu0 %v1090
    %v1092 = vpop.xlane.xlu0 %1091
    %v1093 = vsel %vm72, %v1063, 0.0
    %1094 = vadd.xlane.f32.xlu0 %v1093
    %v1095 = vpop.xlane.xlu0 %1094
    %v1096 = vsel %vm72, %v1064, 0.0
    %1097 = vadd.xlane.f32.xlu0 %v1096
    %v1098 = vpop.xlane.xlu0 %1097
    %v1099 = vsel %vm72, %v1065, 0.0
    %1100 = vadd.xlane.f32.xlu0 %v1099
    %v1101 = vpop.xlane.xlu0 %1100
    %v1102 = vsel %vm72, %v1066, 0.0
    %1103 = vadd.xlane.f32.xlu0 %v1102
    %v1104 = vpop.xlane.xlu0 %1103
    %v1105 = vsel %vm72, %v1067, 0.0
    %1106 = vadd.xlane.f32.xlu0 %v1105
    %v1107 = vpop.xlane.xlu0 %1106
    %v1108 = vsel %vm72, %v1068, 0.0
    %1109 = vadd.xlane.f32.xlu0 %v1108
    %v1110 = vpop.xlane.xlu0 %1109
    %v1111 = vsel %vm72, %v1069, 0.0
    %1112 = vadd.xlane.f32.xlu0 %v1111
    %v1113 = vpop.xlane.xlu0 %1112
    %v1114 = vsel %vm72, %v1070, 0.0
    %1115 = vadd.xlane.f32.xlu0 %v1114
    %v1116 = vpop.xlane.xlu0 %1115
    %v1117 = vsel %vm72, %v1071, 0.0
    %1118 = vadd.xlane.f32.xlu0 %v1117
    %v1119 = vpop.xlane.xlu0 %1118
    %v1120 = vadd.f32 %v1072, %v1075
    %v1121 = vrot.slane %v1120, 4
    %v1122 = vadd.f32 %v1120, %v1121
    %v1123 = vrot.slane %v1122, 2
    %v1124 = vadd.f32 %v1122, %v1123
    %v1125 = vrot.slane %v1124, 1
    %v1126 = vadd.f32 %v1124, %v1125
    %v1127 = vadd.f32 %v1078, %v1081
    %v1128 = vrot.slane %v1127, 4
    %v1129 = vadd.f32 %v1127, %v1128
    %v1130 = vrot.slane %v1129, 2
    %v1131 = vadd.f32 %v1129, %v1130
    %v1132 = vrot.slane %v1131, 1
    %v1133 = vadd.f32 %v1131, %v1132
    %v1134 = vadd.f32 %v1084, %v1087
    %v1135 = vrot.slane %v1134, 4
    %v1136 = vadd.f32 %v1134, %v1135
    %v1137 = vrot.slane %v1136, 2
    %v1138 = vadd.f32 %v1136, %v1137
    %v1139 = vrot.slane %v1138, 1
    %v1140 = vadd.f32 %v1138, %v1139
    %v1141 = vadd.f32 %v1090, %v1093
    %v1142 = vrot.slane %v1141, 4
    %v1143 = vadd.f32 %v1141, %v1142
    %v1144 = vrot.slane %v1143, 2
    %v1145 = vadd.f32 %v1143, %v1144
    %v1146 = vrot.slane %v1145, 1
    %v1147 = vadd.f32 %v1145, %v1146
    %v1148 = vadd.f32 %v1096, %v1099
    %v1149 = vrot.slane %v1148, 4
    %v1150 = vadd.f32 %v1148, %v1149
    %v1151 = vrot.slane %v1150, 2
    %v1152 = vadd.f32 %v1150, %v1151
    %v1153 = vrot.slane %v1152, 1
    %v1154 = vadd.f32 %v1152, %v1153
    %v1155 = vadd.f32 %v1102, %v1105
    %v1156 = vrot.slane %v1155, 4
    %v1157 = vadd.f32 %v1155, %v1156
    %v1158 = vrot.slane %v1157, 2
    %v1159 = vadd.f32 %v1157, %v1158
    %v1160 = vrot.slane %v1159, 1
    %v1161 = vadd.f32 %v1159, %v1160
    %v1162 = vadd.f32 %v1108, %v1111
    %v1163 = vrot.slane %v1162, 4
    %v1164 = vadd.f32 %v1162, %v1163
    %v1165 = vrot.slane %v1164, 2
    %v1166 = vadd.f32 %v1164, %v1165
    %v1167 = vrot.slane %v1166, 1
    %v1168 = vadd.f32 %v1166, %v1167
    %v1169 = vadd.f32 %v1114, %v1117
    %v1170 = vrot.slane %v1169, 4
    %v1171 = vadd.f32 %v1169, %v1170
    %v1172 = vrot.slane %v1171, 2
    %v1173 = vadd.f32 %v1171, %v1172
    %v1174 = vrot.slane %v1173, 1
    %v1175 = vadd.f32 %v1173, %v1174
    %v1176 = vmul.f32 %v998, 32.0
    %v1178 = vlaneseq
    %v1179 = vshrl.u32 %v1178, 7
    %v1180 = vsub.s32 0, %v1179
    %v1181 = vrot.slane %v1176, %v1180
    %v1182 = vlaneseq
    %v1183 = vshrl.u32 %v1182, 7
    %v1184 = vsub.s32 1, %v1183
    %v1185 = vrot.slane %v1176, %v1184
    %v1186 = vlaneseq
    %v1187 = vshrl.u32 %v1186, 7
    %v1188 = vsub.s32 2, %v1187
    %v1189 = vrot.slane %v1176, %v1188
    %v1190 = vlaneseq
    %v1191 = vshrl.u32 %v1190, 7
    %v1192 = vsub.s32 3, %v1191
    %v1193 = vrot.slane %v1176, %v1192
    %v1194 = vlaneseq
    %v1195 = vshrl.u32 %v1194, 7
    %v1196 = vsub.s32 4, %v1195
    %v1197 = vrot.slane %v1176, %v1196
    %v1198 = vlaneseq
    %v1199 = vshrl.u32 %v1198, 7
    %v1200 = vsub.s32 5, %v1199
    %v1201 = vrot.slane %v1176, %v1200
    %v1202 = vlaneseq
    %v1203 = vshrl.u32 %v1202, 7
    %v1204 = vsub.s32 6, %v1203
    %v1205 = vrot.slane %v1176, %v1204
    %v1206 = vlaneseq
    %v1207 = vshrl.u32 %v1206, 7
    %v1208 = vsub.s32 7, %v1207
    %v1209 = vrot.slane %v1176, %v1208
    %v1218 = vsub.f32 %v797, %v1181
    %v1219 = vsub.f32 %v800, %v1181
    %v1220 = vsub.f32 %v803, %v1185
    %v1221 = vsub.f32 %v806, %v1185
    %v1222 = vsub.f32 %v809, %v1189
    %v1223 = vsub.f32 %v812, %v1189
    %v1224 = vsub.f32 %v815, %v1193
    %v1225 = vsub.f32 %v818, %v1193
    %v1226 = vsub.f32 %v821, %v1197
    %v1227 = vsub.f32 %v824, %v1197
    %v1228 = vsub.f32 %v827, %v1201
    %v1229 = vsub.f32 %v830, %v1201
    %v1230 = vsub.f32 %v833, %v1205
    %v1231 = vsub.f32 %v836, %v1205
    %v1232 = vsub.f32 %v839, %v1209
    %v1233 = vsub.f32 %v842, %v1209
    %v1234 = vmul.f32 %v998, 16.0
    %v1236 = vrot.slane %v1234, 1
    %v1237 = vrot.slane %v1234, 2
    %v1238 = vrot.slane %v1234, 3
    %v1239 = vrot.slane %v1234, 4
    %v1240 = vrot.slane %v1234, 5
    %v1241 = vrot.slane %v1234, 6
    %v1242 = vrot.slane %v1234, 7
    %v1251 = vsub.f32 %v849, %v1234
    %v1252 = vsub.f32 %v856, %v1236
    %v1253 = vsub.f32 %v863, %v1237
    %v1254 = vsub.f32 %v870, %v1238
    %v1255 = vsub.f32 %v877, %v1239
    %v1256 = vsub.f32 %v884, %v1240
    %v1257 = vsub.f32 %v891, %v1241
    %v1258 = vsub.f32 %v898, %v1242
    %1275 = vset.pattern.permute.xlu0 0
    %1276 = vperm.xlu0 %1275, %v1218
    %v1277 = vpop.permute.xlu0 %1276
    %1278 = vset.pattern.permute.xlu0 0
    %1279 = vperm.xlu0 %1278, %v1219
    %v1280 = vpop.permute.xlu0 %1279
    %1281 = vset.pattern.permute.xlu0 0
    %1282 = vperm.xlu0 %1281, %v1220
    %v1283 = vpop.permute.xlu0 %1282
    %1284 = vset.pattern.permute.xlu0 0
    %1285 = vperm.xlu0 %1284, %v1221
    %v1286 = vpop.permute.xlu0 %1285
    %1287 = vset.pattern.permute.xlu0 0
    %1288 = vperm.xlu0 %1287, %v1222
    %v1289 = vpop.permute.xlu0 %1288
    %1290 = vset.pattern.permute.xlu0 0
    %1291 = vperm.xlu0 %1290, %v1223
    %v1292 = vpop.permute.xlu0 %1291
    %1293 = vset.pattern.permute.xlu0 0
    %1294 = vperm.xlu0 %1293, %v1224
    %v1295 = vpop.permute.xlu0 %1294
    %1296 = vset.pattern.permute.xlu0 0
    %1297 = vperm.xlu0 %1296, %v1225
    %v1298 = vpop.permute.xlu0 %1297
    %1299 = vset.pattern.permute.xlu0 0
    %1300 = vperm.xlu0 %1299, %v1226
    %v1301 = vpop.permute.xlu0 %1300
    %1302 = vset.pattern.permute.xlu0 0
    %1303 = vperm.xlu0 %1302, %v1227
    %v1304 = vpop.permute.xlu0 %1303
    %1305 = vset.pattern.permute.xlu0 0
    %1306 = vperm.xlu0 %1305, %v1228
    %v1307 = vpop.permute.xlu0 %1306
    %1308 = vset.pattern.permute.xlu0 0
    %1309 = vperm.xlu0 %1308, %v1229
    %v1310 = vpop.permute.xlu0 %1309
    %1311 = vset.pattern.permute.xlu0 0
    %1312 = vperm.xlu0 %1311, %v1230
    %v1313 = vpop.permute.xlu0 %1312
    %1314 = vset.pattern.permute.xlu0 0
    %1315 = vperm.xlu0 %1314, %v1231
    %v1316 = vpop.permute.xlu0 %1315
    %1317 = vset.pattern.permute.xlu0 0
    %1318 = vperm.xlu0 %1317, %v1232
    %v1319 = vpop.permute.xlu0 %1318
    %1320 = vset.pattern.permute.xlu0 0
    %1321 = vperm.xlu0 %1320, %v1233
    %v1322 = vpop.permute.xlu0 %1321
    %v1323 = vlaneseq
    %v1324 = vshrl.u32 %v1323, 7
    %v1325 = vsub.s32 %v194, %v1324
    %v1326 = vrot.slane %v1277, %v1325
    %v1327 = vlaneseq
    %v1328 = vshrl.u32 %v1327, 7
    %v1329 = vsub.s32 %v199, %v1328
    %v1330 = vrot.slane %v1280, %v1329
    %v1331 = vsel %vm204, %v1330, %v1326
    %v1332 = vlaneseq
    %v1333 = vshrl.u32 %v1332, 7
    %v1334 = vsub.s32 %v194, %v1333
    %v1335 = vrot.slane %v1283, %v1334
    %v1336 = vlaneseq
    %v1337 = vshrl.u32 %v1336, 7
    %v1338 = vsub.s32 %v199, %v1337
    %v1339 = vrot.slane %v1286, %v1338
    %v1340 = vsel %vm204, %v1339, %v1335
    %v1341 = vlaneseq
    %v1342 = vshrl.u32 %v1341, 7
    %v1343 = vsub.s32 %v194, %v1342
    %v1344 = vrot.slane %v1289, %v1343
    %v1345 = vlaneseq
    %v1346 = vshrl.u32 %v1345, 7
    %v1347 = vsub.s32 %v199, %v1346
    %v1348 = vrot.slane %v1292, %v1347
    %v1349 = vsel %vm204, %v1348, %v1344
    %v1350 = vlaneseq
    %v1351 = vshrl.u32 %v1350, 7
    %v1352 = vsub.s32 %v194, %v1351
    %v1353 = vrot.slane %v1295, %v1352
    %v1354 = vlaneseq
    %v1355 = vshrl.u32 %v1354, 7
    %v1356 = vsub.s32 %v199, %v1355
    %v1357 = vrot.slane %v1298, %v1356
    %v1358 = vsel %vm204, %v1357, %v1353
    %v1359 = vlaneseq
    %v1360 = vshrl.u32 %v1359, 7
    %v1361 = vsub.s32 %v194, %v1360
    %v1362 = vrot.slane %v1301, %v1361
    %v1363 = vlaneseq
    %v1364 = vshrl.u32 %v1363, 7
    %v1365 = vsub.s32 %v199, %v1364
    %v1366 = vrot.slane %v1304, %v1365
    %v1367 = vsel %vm204, %v1366, %v1362
    %v1368 = vlaneseq
    %v1369 = vshrl.u32 %v1368, 7
    %v1370 = vsub.s32 %v194, %v1369
    %v1371 = vrot.slane %v1307, %v1370
    %v1372 = vlaneseq
    %v1373 = vshrl.u32 %v1372, 7
    %v1374 = vsub.s32 %v199, %v1373
    %v1375 = vrot.slane %v1310, %v1374
    %v1376 = vsel %vm204, %v1375, %v1371
    %v1377 = vlaneseq
    %v1378 = vshrl.u32 %v1377, 7
    %v1379 = vsub.s32 %v194, %v1378
    %v1380 = vrot.slane %v1313, %v1379
    %v1381 = vlaneseq
    %v1382 = vshrl.u32 %v1381, 7
    %v1383 = vsub.s32 %v199, %v1382
    %v1384 = vrot.slane %v1316, %v1383
    %v1385 = vsel %vm204, %v1384, %v1380
    %v1386 = vlaneseq
    %v1387 = vshrl.u32 %v1386, 7
    %v1388 = vsub.s32 %v194, %v1387
    %v1389 = vrot.slane %v1319, %v1388
    %v1390 = vlaneseq
    %v1391 = vshrl.u32 %v1390, 7
    %v1392 = vsub.s32 %v199, %v1391
    %v1393 = vrot.slane %v1322, %v1392
    %v1394 = vsel %vm204, %v1393, %v1389
    %v1395 = vsel %vm269, %v1340, %v1331
    %v1396 = vsel %vm271, %v1349, %v1395
    %v1397 = vsel %vm273, %v1358, %v1396
    %v1398 = vsel %vm275, %v1367, %v1397
    %v1399 = vsel %vm277, %v1376, %v1398
    %v1400 = vsel %vm279, %v1385, %v1399
    %v1401 = vsel %vm281, %v1394, %v1400
    %v1403 = vsel %vm284, %v1401, 0.0
    %1404 = vadd.xlane.f32.xlu0 %v1403
    %v1405 = vpop.xlane.xlu0 %1404
    %v1422 = vlaneseq
    %v1423 = vshrl.u32 %v1422, 7
    %v1424 = vsub.s32 %v194, %v1423
    %v1425 = vrot.slane %v1074, %v1424
    %v1426 = vlaneseq
    %v1427 = vshrl.u32 %v1426, 7
    %v1428 = vsub.s32 %v199, %v1427
    %v1429 = vrot.slane %v1077, %v1428
    %v1430 = vsel %vm204, %v1429, %v1425
    %v1431 = vlaneseq
    %v1432 = vshrl.u32 %v1431, 7
    %v1433 = vsub.s32 %v194, %v1432
    %v1434 = vrot.slane %v1080, %v1433
    %v1435 = vlaneseq
    %v1436 = vshrl.u32 %v1435, 7
    %v1437 = vsub.s32 %v199, %v1436
    %v1438 = vrot.slane %v1083, %v1437
    %v1439 = vsel %vm204, %v1438, %v1434
    %v1440 = vlaneseq
    %v1441 = vshrl.u32 %v1440, 7
    %v1442 = vsub.s32 %v194, %v1441
    %v1443 = vrot.slane %v1086, %v1442
    %v1444 = vlaneseq
    %v1445 = vshrl.u32 %v1444, 7
    %v1446 = vsub.s32 %v199, %v1445
    %v1447 = vrot.slane %v1089, %v1446
    %v1448 = vsel %vm204, %v1447, %v1443
    %v1449 = vlaneseq
    %v1450 = vshrl.u32 %v1449, 7
    %v1451 = vsub.s32 %v194, %v1450
    %v1452 = vrot.slane %v1092, %v1451
    %v1453 = vlaneseq
    %v1454 = vshrl.u32 %v1453, 7
    %v1455 = vsub.s32 %v199, %v1454
    %v1456 = vrot.slane %v1095, %v1455
    %v1457 = vsel %vm204, %v1456, %v1452
    %v1458 = vlaneseq
    %v1459 = vshrl.u32 %v1458, 7
    %v1460 = vsub.s32 %v194, %v1459
    %v1461 = vrot.slane %v1098, %v1460
    %v1462 = vlaneseq
    %v1463 = vshrl.u32 %v1462, 7
    %v1464 = vsub.s32 %v199, %v1463
    %v1465 = vrot.slane %v1101, %v1464
    %v1466 = vsel %vm204, %v1465, %v1461
    %v1467 = vlaneseq
    %v1468 = vshrl.u32 %v1467, 7
    %v1469 = vsub.s32 %v194, %v1468
    %v1470 = vrot.slane %v1104, %v1469
    %v1471 = vlaneseq
    %v1472 = vshrl.u32 %v1471, 7
    %v1473 = vsub.s32 %v199, %v1472
    %v1474 = vrot.slane %v1107, %v1473
    %v1475 = vsel %vm204, %v1474, %v1470
    %v1476 = vlaneseq
    %v1477 = vshrl.u32 %v1476, 7
    %v1478 = vsub.s32 %v194, %v1477
    %v1479 = vrot.slane %v1110, %v1478
    %v1480 = vlaneseq
    %v1481 = vshrl.u32 %v1480, 7
    %v1482 = vsub.s32 %v199, %v1481
    %v1483 = vrot.slane %v1113, %v1482
    %v1484 = vsel %vm204, %v1483, %v1479
    %v1485 = vlaneseq
    %v1486 = vshrl.u32 %v1485, 7
    %v1487 = vsub.s32 %v194, %v1486
    %v1488 = vrot.slane %v1116, %v1487
    %v1489 = vlaneseq
    %v1490 = vshrl.u32 %v1489, 7
    %v1491 = vsub.s32 %v199, %v1490
    %v1492 = vrot.slane %v1119, %v1491
    %v1493 = vsel %vm204, %v1492, %v1488
    %v1494 = vsel %vm269, %v1439, %v1430
    %v1495 = vsel %vm271, %v1448, %v1494
    %v1496 = vsel %vm273, %v1457, %v1495
    %v1497 = vsel %vm275, %v1466, %v1496
    %v1498 = vsel %vm277, %v1475, %v1497
    %v1499 = vsel %vm279, %v1484, %v1498
    %v1500 = vsel %vm281, %v1493, %v1499
    %v1502 = vsel %vm284, %v1500, 0.0
    %1503 = vadd.xlane.f32.xlu0 %v1502
    %v1504 = vpop.xlane.xlu0 %1503
    %v1505 = vmul.f32 %v695, %v695
    %v1506 = vmul.f32 %v1505, 0.001953125
    %v1507 = vsub.f32 %v794, %v1506
    %v1508 = vmul.f32 %v1507, 0.0019569471
    %v1509 = vmax.f32 %v1508, 0.0
    %v1510 = vrsqrt.pop %v1509
    %v1511 = vmul.f32 %v1509, %v1510
    %vm1512 = vcmp.eq.f32.partialorder %v1509, inf
    %v1513 = vsel %vm1512, %v1509, %v1511
    %vm1514 = vcmp.eq.f32.partialorder %v1509, 0.0
    %v1515 = vand.u32 %v1509, 2147483648
    %v1516 = vsel %vm1514, %v1515, %v1513
    %v1517 = vmul.f32 %v1405, %v1405
    %v1518 = vmul.f32 %v1517, 0.001953125
    %v1519 = vsub.f32 %v1504, %v1518
    %v1520 = vmul.f32 %v1519, 0.0019569471
    %v1521 = vmax.f32 %v1520, 0.0
    %v1522 = vrsqrt.pop %v1521
    %v1523 = vmul.f32 %v1521, %v1522
    %vm1524 = vcmp.eq.f32.partialorder %v1521, inf
    %v1525 = vsel %vm1524, %v1521, %v1523
    %vm1526 = vcmp.eq.f32.partialorder %v1521, 0.0
    %v1527 = vand.u32 %v1521, 2147483648
    %v1528 = vsel %vm1526, %v1527, %v1525
    %v1529 = vsub.f32 %v1516, %v1528
    %v1530 = vmul.f32 %v1529, %v1529
    %vm1531 = vcmask 7168
    %v1532 = vsel %vm1531, %v1530, 0.0
    %1533 = vadd.xlane.f32.xlu0 %v1532
    %v1534 = vpop.xlane.xlu0 %1533
    %v1535 = vrot.slane %v1534, 4
    %v1536 = vadd.f32 %v1534, %v1535
    %v1537 = vrot.slane %v1536, 2
    %v1538 = vadd.f32 %v1536, %v1537
    %v1539 = vrot.slane %v1538, 1
    %v1540 = vadd.f32 %v1538, %v1539
    %s1541 = vtos %v1540
    %v1542 = vrcp.pop 8.0
    %s1543 = vtos %v1542
    %s1544 = smul.f32 %s1541, %s1543
    %v1545 = vmul.f32 %v541, %v541
    %v1546 = vmul.f32 %v542, %v542
    %v1547 = vmul.f32 %v543, %v543
    %v1548 = vmul.f32 %v544, %v544
    %v1549 = vmul.f32 %v545, %v545
    %v1550 = vmul.f32 %v546, %v546
    %v1551 = vmul.f32 %v547, %v547
    %v1552 = vmul.f32 %v548, %v548
    %v1553 = vmul.f32 %v1545, 0.0625
    %v1554 = vmul.f32 %v1546, 0.0625
    %v1555 = vmul.f32 %v1547, 0.0625
    %v1556 = vmul.f32 %v1548, 0.0625
    %v1557 = vmul.f32 %v1549, 0.0625
    %v1558 = vmul.f32 %v1550, 0.0625
    %v1559 = vmul.f32 %v1551, 0.0625
    %v1560 = vmul.f32 %v1552, 0.0625
    %v1561 = vsub.f32 %v416, %v1553
    %v1562 = vsub.f32 %v423, %v1554
    %v1563 = vsub.f32 %v430, %v1555
    %v1564 = vsub.f32 %v437, %v1556
    %v1565 = vsub.f32 %v444, %v1557
    %v1566 = vsub.f32 %v451, %v1558
    %v1567 = vsub.f32 %v458, %v1559
    %v1568 = vsub.f32 %v465, %v1560
    %v1569 = vmul.f32 %v1561, 0.06666667
    %v1570 = vmul.f32 %v1562, 0.06666667
    %v1571 = vmul.f32 %v1563, 0.06666667
    %v1572 = vmul.f32 %v1564, 0.06666667
    %v1573 = vmul.f32 %v1565, 0.06666667
    %v1574 = vmul.f32 %v1566, 0.06666667
    %v1575 = vmul.f32 %v1567, 0.06666667
    %v1576 = vmul.f32 %v1568, 0.06666667
    %v1577 = vmax.f32 %v1569, 0.0
    %v1578 = vmax.f32 %v1570, 0.0
    %v1579 = vmax.f32 %v1571, 0.0
    %v1580 = vmax.f32 %v1572, 0.0
    %v1581 = vmax.f32 %v1573, 0.0
    %v1582 = vmax.f32 %v1574, 0.0
    %v1583 = vmax.f32 %v1575, 0.0
    %v1584 = vmax.f32 %v1576, 0.0
    %v1585 = vrsqrt.pop %v1577
    %v1586 = vmul.f32 %v1577, %v1585
    %vm1587 = vcmp.eq.f32.partialorder %v1577, inf
    %v1588 = vsel %vm1587, %v1577, %v1586
    %vm1589 = vcmp.eq.f32.partialorder %v1577, 0.0
    %v1590 = vand.u32 %v1577, 2147483648
    %v1591 = vsel %vm1589, %v1590, %v1588
    %v1592 = vrsqrt.pop %v1578
    %v1593 = vmul.f32 %v1578, %v1592
    %vm1594 = vcmp.eq.f32.partialorder %v1578, inf
    %v1595 = vsel %vm1594, %v1578, %v1593
    %vm1596 = vcmp.eq.f32.partialorder %v1578, 0.0
    %v1597 = vand.u32 %v1578, 2147483648
    %v1598 = vsel %vm1596, %v1597, %v1595
    %v1599 = vrsqrt.pop %v1579
    %v1600 = vmul.f32 %v1579, %v1599
    %vm1601 = vcmp.eq.f32.partialorder %v1579, inf
    %v1602 = vsel %vm1601, %v1579, %v1600
    %vm1603 = vcmp.eq.f32.partialorder %v1579, 0.0
    %v1604 = vand.u32 %v1579, 2147483648
    %v1605 = vsel %vm1603, %v1604, %v1602
    %v1606 = vrsqrt.pop %v1580
    %v1607 = vmul.f32 %v1580, %v1606
    %vm1608 = vcmp.eq.f32.partialorder %v1580, inf
    %v1609 = vsel %vm1608, %v1580, %v1607
    %vm1610 = vcmp.eq.f32.partialorder %v1580, 0.0
    %v1611 = vand.u32 %v1580, 2147483648
    %v1612 = vsel %vm1610, %v1611, %v1609
    %v1613 = vrsqrt.pop %v1581
    %v1614 = vmul.f32 %v1581, %v1613
    %vm1615 = vcmp.eq.f32.partialorder %v1581, inf
    %v1616 = vsel %vm1615, %v1581, %v1614
    %vm1617 = vcmp.eq.f32.partialorder %v1581, 0.0
    %v1618 = vand.u32 %v1581, 2147483648
    %v1619 = vsel %vm1617, %v1618, %v1616
    %v1620 = vrsqrt.pop %v1582
    %v1621 = vmul.f32 %v1582, %v1620
    %vm1622 = vcmp.eq.f32.partialorder %v1582, inf
    %v1623 = vsel %vm1622, %v1582, %v1621
    %vm1624 = vcmp.eq.f32.partialorder %v1582, 0.0
    %v1625 = vand.u32 %v1582, 2147483648
    %v1626 = vsel %vm1624, %v1625, %v1623
    %v1627 = vrsqrt.pop %v1583
    %v1628 = vmul.f32 %v1583, %v1627
    %vm1629 = vcmp.eq.f32.partialorder %v1583, inf
    %v1630 = vsel %vm1629, %v1583, %v1628
    %vm1631 = vcmp.eq.f32.partialorder %v1583, 0.0
    %v1632 = vand.u32 %v1583, 2147483648
    %v1633 = vsel %vm1631, %v1632, %v1630
    %v1634 = vrsqrt.pop %v1584
    %v1635 = vmul.f32 %v1584, %v1634
    %vm1636 = vcmp.eq.f32.partialorder %v1584, inf
    %v1637 = vsel %vm1636, %v1584, %v1635
    %vm1638 = vcmp.eq.f32.partialorder %v1584, 0.0
    %v1639 = vand.u32 %v1584, 2147483648
    %v1640 = vsel %vm1638, %v1639, %v1637
    %v1641 = vmul.f32 %v1251, %v1251
    %v1642 = vmul.f32 %v1252, %v1252
    %v1643 = vmul.f32 %v1253, %v1253
    %v1644 = vmul.f32 %v1254, %v1254
    %v1645 = vmul.f32 %v1255, %v1255
    %v1646 = vmul.f32 %v1256, %v1256
    %v1647 = vmul.f32 %v1257, %v1257
    %v1648 = vmul.f32 %v1258, %v1258
    %v1649 = vmul.f32 %v1641, 0.0625
    %v1650 = vmul.f32 %v1642, 0.0625
    %v1651 = vmul.f32 %v1643, 0.0625
    %v1652 = vmul.f32 %v1644, 0.0625
    %v1653 = vmul.f32 %v1645, 0.0625
    %v1654 = vmul.f32 %v1646, 0.0625
    %v1655 = vmul.f32 %v1647, 0.0625
    %v1656 = vmul.f32 %v1648, 0.0625
    %v1657 = vsub.f32 %v1126, %v1649
    %v1658 = vsub.f32 %v1133, %v1650
    %v1659 = vsub.f32 %v1140, %v1651
    %v1660 = vsub.f32 %v1147, %v1652
    %v1661 = vsub.f32 %v1154, %v1653
    %v1662 = vsub.f32 %v1161, %v1654
    %v1663 = vsub.f32 %v1168, %v1655
    %v1664 = vsub.f32 %v1175, %v1656
    %v1665 = vmul.f32 %v1657, 0.06666667
    %v1666 = vmul.f32 %v1658, 0.06666667
    %v1667 = vmul.f32 %v1659, 0.06666667
    %v1668 = vmul.f32 %v1660, 0.06666667
    %v1669 = vmul.f32 %v1661, 0.06666667
    %v1670 = vmul.f32 %v1662, 0.06666667
    %v1671 = vmul.f32 %v1663, 0.06666667
    %v1672 = vmul.f32 %v1664, 0.06666667
    %v1673 = vmax.f32 %v1665, 0.0
    %v1674 = vmax.f32 %v1666, 0.0
    %v1675 = vmax.f32 %v1667, 0.0
    %v1676 = vmax.f32 %v1668, 0.0
    %v1677 = vmax.f32 %v1669, 0.0
    %v1678 = vmax.f32 %v1670, 0.0
    %v1679 = vmax.f32 %v1671, 0.0
    %v1680 = vmax.f32 %v1672, 0.0
    %v1681 = vrsqrt.pop %v1673
    %v1682 = vmul.f32 %v1673, %v1681
    %vm1683 = vcmp.eq.f32.partialorder %v1673, inf
    %v1684 = vsel %vm1683, %v1673, %v1682
    %vm1685 = vcmp.eq.f32.partialorder %v1673, 0.0
    %v1686 = vand.u32 %v1673, 2147483648
    %v1687 = vsel %vm1685, %v1686, %v1684
    %v1688 = vrsqrt.pop %v1674
    %v1689 = vmul.f32 %v1674, %v1688
    %vm1690 = vcmp.eq.f32.partialorder %v1674, inf
    %v1691 = vsel %vm1690, %v1674, %v1689
    %vm1692 = vcmp.eq.f32.partialorder %v1674, 0.0
    %v1693 = vand.u32 %v1674, 2147483648
    %v1694 = vsel %vm1692, %v1693, %v1691
    %v1695 = vrsqrt.pop %v1675
    %v1696 = vmul.f32 %v1675, %v1695
    %vm1697 = vcmp.eq.f32.partialorder %v1675, inf
    %v1698 = vsel %vm1697, %v1675, %v1696
    %vm1699 = vcmp.eq.f32.partialorder %v1675, 0.0
    %v1700 = vand.u32 %v1675, 2147483648
    %v1701 = vsel %vm1699, %v1700, %v1698
    %v1702 = vrsqrt.pop %v1676
    %v1703 = vmul.f32 %v1676, %v1702
    %vm1704 = vcmp.eq.f32.partialorder %v1676, inf
    %v1705 = vsel %vm1704, %v1676, %v1703
    %vm1706 = vcmp.eq.f32.partialorder %v1676, 0.0
    %v1707 = vand.u32 %v1676, 2147483648
    %v1708 = vsel %vm1706, %v1707, %v1705
    %v1709 = vrsqrt.pop %v1677
    %v1710 = vmul.f32 %v1677, %v1709
    %vm1711 = vcmp.eq.f32.partialorder %v1677, inf
    %v1712 = vsel %vm1711, %v1677, %v1710
    %vm1713 = vcmp.eq.f32.partialorder %v1677, 0.0
    %v1714 = vand.u32 %v1677, 2147483648
    %v1715 = vsel %vm1713, %v1714, %v1712
    %v1716 = vrsqrt.pop %v1678
    %v1717 = vmul.f32 %v1678, %v1716
    %vm1718 = vcmp.eq.f32.partialorder %v1678, inf
    %v1719 = vsel %vm1718, %v1678, %v1717
    %vm1720 = vcmp.eq.f32.partialorder %v1678, 0.0
    %v1721 = vand.u32 %v1678, 2147483648
    %v1722 = vsel %vm1720, %v1721, %v1719
    %v1723 = vrsqrt.pop %v1679
    %v1724 = vmul.f32 %v1679, %v1723
    %vm1725 = vcmp.eq.f32.partialorder %v1679, inf
    %v1726 = vsel %vm1725, %v1679, %v1724
    %vm1727 = vcmp.eq.f32.partialorder %v1679, 0.0
    %v1728 = vand.u32 %v1679, 2147483648
    %v1729 = vsel %vm1727, %v1728, %v1726
    %v1730 = vrsqrt.pop %v1680
    %v1731 = vmul.f32 %v1680, %v1730
    %vm1732 = vcmp.eq.f32.partialorder %v1680, inf
    %v1733 = vsel %vm1732, %v1680, %v1731
    %vm1734 = vcmp.eq.f32.partialorder %v1680, 0.0
    %v1735 = vand.u32 %v1680, 2147483648
    %v1736 = vsel %vm1734, %v1735, %v1733
    %v1737 = vsub.f32 %v1591, %v1687
    %v1738 = vsub.f32 %v1598, %v1694
    %v1739 = vsub.f32 %v1605, %v1701
    %v1740 = vsub.f32 %v1612, %v1708
    %v1741 = vsub.f32 %v1619, %v1715
    %v1742 = vsub.f32 %v1626, %v1722
    %v1743 = vsub.f32 %v1633, %v1729
    %v1744 = vsub.f32 %v1640, %v1736
    %v1745 = vmul.f32 %v1737, %v1737
    %v1746 = vmul.f32 %v1738, %v1738
    %v1747 = vmul.f32 %v1739, %v1739
    %v1748 = vmul.f32 %v1740, %v1740
    %v1749 = vmul.f32 %v1741, %v1741
    %v1750 = vmul.f32 %v1742, %v1742
    %v1751 = vmul.f32 %v1743, %v1743
    %v1752 = vmul.f32 %v1744, %v1744
    %v1761 = vrot.slane %v1746, 7
    %v1762 = vsel %vm269, %v1761, %v1745
    %v1763 = vrot.slane %v1747, 6
    %v1764 = vsel %vm271, %v1763, %v1762
    %v1765 = vrot.slane %v1748, 5
    %v1766 = vsel %vm273, %v1765, %v1764
    %v1767 = vrot.slane %v1749, 4
    %v1768 = vsel %vm275, %v1767, %v1766
    %v1769 = vrot.slane %v1750, 3
    %v1770 = vsel %vm277, %v1769, %v1768
    %v1771 = vrot.slane %v1751, 2
    %v1772 = vsel %vm279, %v1771, %v1770
    %v1773 = vrot.slane %v1752, 1
    %v1774 = vsel %vm281, %v1773, %v1772
    %v1776 = vsel %vm72, %v1774, 0.0
    %1777 = vadd.xlane.f32.xlu0 %v1776
    %v1778 = vpop.xlane.xlu0 %1777
    %v1779 = vrot.slane %v1778, 4
    %v1780 = vadd.f32 %v1778, %v1779
    %v1781 = vrot.slane %v1780, 2
    %v1782 = vadd.f32 %v1780, %v1781
    %v1783 = vrot.slane %v1782, 1
    %v1784 = vadd.f32 %v1782, %v1783
    %s1785 = vtos %v1784
    %v1786 = vrcp.pop 256.0
    %s1787 = vtos %v1786
    %s1788 = smul.f32 %s1785, %s1787
    %v1789 = vmul.f32 %v508, %v508
    %v1790 = vmul.f32 %v509, %v509
    %v1791 = vmul.f32 %v510, %v510
    %v1792 = vmul.f32 %v511, %v511
    %v1793 = vmul.f32 %v512, %v512
    %v1794 = vmul.f32 %v513, %v513
    %v1795 = vmul.f32 %v514, %v514
    %v1796 = vmul.f32 %v515, %v515
    %v1797 = vmul.f32 %v516, %v516
    %v1798 = vmul.f32 %v517, %v517
    %v1799 = vmul.f32 %v518, %v518
    %v1800 = vmul.f32 %v519, %v519
    %v1801 = vmul.f32 %v520, %v520
    %v1802 = vmul.f32 %v521, %v521
    %v1803 = vmul.f32 %v522, %v522
    %v1804 = vmul.f32 %v523, %v523
    %v1805 = vmul.f32 %v1789, 0.03125
    %v1806 = vmul.f32 %v1790, 0.03125
    %v1807 = vmul.f32 %v1791, 0.03125
    %v1808 = vmul.f32 %v1792, 0.03125
    %v1809 = vmul.f32 %v1793, 0.03125
    %v1810 = vmul.f32 %v1794, 0.03125
    %v1811 = vmul.f32 %v1795, 0.03125
    %v1812 = vmul.f32 %v1796, 0.03125
    %v1813 = vmul.f32 %v1797, 0.03125
    %v1814 = vmul.f32 %v1798, 0.03125
    %v1815 = vmul.f32 %v1799, 0.03125
    %v1816 = vmul.f32 %v1800, 0.03125
    %v1817 = vmul.f32 %v1801, 0.03125
    %v1818 = vmul.f32 %v1802, 0.03125
    %v1819 = vmul.f32 %v1803, 0.03125
    %v1820 = vmul.f32 %v1804, 0.03125
    %v1821 = vsub.f32 %v364, %v1805
    %v1822 = vsub.f32 %v367, %v1806
    %v1823 = vsub.f32 %v370, %v1807
    %v1824 = vsub.f32 %v373, %v1808
    %v1825 = vsub.f32 %v376, %v1809
    %v1826 = vsub.f32 %v379, %v1810
    %v1827 = vsub.f32 %v382, %v1811
    %v1828 = vsub.f32 %v385, %v1812
    %v1829 = vsub.f32 %v388, %v1813
    %v1830 = vsub.f32 %v391, %v1814
    %v1831 = vsub.f32 %v394, %v1815
    %v1832 = vsub.f32 %v397, %v1816
    %v1833 = vsub.f32 %v400, %v1817
    %v1834 = vsub.f32 %v403, %v1818
    %v1835 = vsub.f32 %v406, %v1819
    %v1836 = vsub.f32 %v409, %v1820
    %v1837 = vmul.f32 %v1821, 0.032258064
    %v1838 = vmul.f32 %v1822, 0.032258064
    %v1839 = vmul.f32 %v1823, 0.032258064
    %v1840 = vmul.f32 %v1824, 0.032258064
    %v1841 = vmul.f32 %v1825, 0.032258064
    %v1842 = vmul.f32 %v1826, 0.032258064
    %v1843 = vmul.f32 %v1827, 0.032258064
    %v1844 = vmul.f32 %v1828, 0.032258064
    %v1845 = vmul.f32 %v1829, 0.032258064
    %v1846 = vmul.f32 %v1830, 0.032258064
    %v1847 = vmul.f32 %v1831, 0.032258064
    %v1848 = vmul.f32 %v1832, 0.032258064
    %v1849 = vmul.f32 %v1833, 0.032258064
    %v1850 = vmul.f32 %v1834, 0.032258064
    %v1851 = vmul.f32 %v1835, 0.032258064
    %v1852 = vmul.f32 %v1836, 0.032258064
    %v1853 = vmax.f32 %v1837, 0.0
    %v1854 = vmax.f32 %v1838, 0.0
    %v1855 = vmax.f32 %v1839, 0.0
    %v1856 = vmax.f32 %v1840, 0.0
    %v1857 = vmax.f32 %v1841, 0.0
    %v1858 = vmax.f32 %v1842, 0.0
    %v1859 = vmax.f32 %v1843, 0.0
    %v1860 = vmax.f32 %v1844, 0.0
    %v1861 = vmax.f32 %v1845, 0.0
    %v1862 = vmax.f32 %v1846, 0.0
    %v1863 = vmax.f32 %v1847, 0.0
    %v1864 = vmax.f32 %v1848, 0.0
    %v1865 = vmax.f32 %v1849, 0.0
    %v1866 = vmax.f32 %v1850, 0.0
    %v1867 = vmax.f32 %v1851, 0.0
    %v1868 = vmax.f32 %v1852, 0.0
    %v1869 = vrsqrt.pop %v1853
    %v1870 = vmul.f32 %v1853, %v1869
    %vm1871 = vcmp.eq.f32.partialorder %v1853, inf
    %v1872 = vsel %vm1871, %v1853, %v1870
    %vm1873 = vcmp.eq.f32.partialorder %v1853, 0.0
    %v1874 = vand.u32 %v1853, 2147483648
    %v1875 = vsel %vm1873, %v1874, %v1872
    %v1876 = vrsqrt.pop %v1854
    %v1877 = vmul.f32 %v1854, %v1876
    %vm1878 = vcmp.eq.f32.partialorder %v1854, inf
    %v1879 = vsel %vm1878, %v1854, %v1877
    %vm1880 = vcmp.eq.f32.partialorder %v1854, 0.0
    %v1881 = vand.u32 %v1854, 2147483648
    %v1882 = vsel %vm1880, %v1881, %v1879
    %v1883 = vrsqrt.pop %v1855
    %v1884 = vmul.f32 %v1855, %v1883
    %vm1885 = vcmp.eq.f32.partialorder %v1855, inf
    %v1886 = vsel %vm1885, %v1855, %v1884
    %vm1887 = vcmp.eq.f32.partialorder %v1855, 0.0
    %v1888 = vand.u32 %v1855, 2147483648
    %v1889 = vsel %vm1887, %v1888, %v1886
    %v1890 = vrsqrt.pop %v1856
    %v1891 = vmul.f32 %v1856, %v1890
    %vm1892 = vcmp.eq.f32.partialorder %v1856, inf
    %v1893 = vsel %vm1892, %v1856, %v1891
    %vm1894 = vcmp.eq.f32.partialorder %v1856, 0.0
    %v1895 = vand.u32 %v1856, 2147483648
    %v1896 = vsel %vm1894, %v1895, %v1893
    %v1897 = vrsqrt.pop %v1857
    %v1898 = vmul.f32 %v1857, %v1897
    %vm1899 = vcmp.eq.f32.partialorder %v1857, inf
    %v1900 = vsel %vm1899, %v1857, %v1898
    %vm1901 = vcmp.eq.f32.partialorder %v1857, 0.0
    %v1902 = vand.u32 %v1857, 2147483648
    %v1903 = vsel %vm1901, %v1902, %v1900
    %v1904 = vrsqrt.pop %v1858
    %v1905 = vmul.f32 %v1858, %v1904
    %vm1906 = vcmp.eq.f32.partialorder %v1858, inf
    %v1907 = vsel %vm1906, %v1858, %v1905
    %vm1908 = vcmp.eq.f32.partialorder %v1858, 0.0
    %v1909 = vand.u32 %v1858, 2147483648
    %v1910 = vsel %vm1908, %v1909, %v1907
    %v1911 = vrsqrt.pop %v1859
    %v1912 = vmul.f32 %v1859, %v1911
    %vm1913 = vcmp.eq.f32.partialorder %v1859, inf
    %v1914 = vsel %vm1913, %v1859, %v1912
    %vm1915 = vcmp.eq.f32.partialorder %v1859, 0.0
    %v1916 = vand.u32 %v1859, 2147483648
    %v1917 = vsel %vm1915, %v1916, %v1914
    %v1918 = vrsqrt.pop %v1860
    %v1919 = vmul.f32 %v1860, %v1918
    %vm1920 = vcmp.eq.f32.partialorder %v1860, inf
    %v1921 = vsel %vm1920, %v1860, %v1919
    %vm1922 = vcmp.eq.f32.partialorder %v1860, 0.0
    %v1923 = vand.u32 %v1860, 2147483648
    %v1924 = vsel %vm1922, %v1923, %v1921
    %v1925 = vrsqrt.pop %v1861
    %v1926 = vmul.f32 %v1861, %v1925
    %vm1927 = vcmp.eq.f32.partialorder %v1861, inf
    %v1928 = vsel %vm1927, %v1861, %v1926
    %vm1929 = vcmp.eq.f32.partialorder %v1861, 0.0
    %v1930 = vand.u32 %v1861, 2147483648
    %v1931 = vsel %vm1929, %v1930, %v1928
    %v1932 = vrsqrt.pop %v1862
    %v1933 = vmul.f32 %v1862, %v1932
    %vm1934 = vcmp.eq.f32.partialorder %v1862, inf
    %v1935 = vsel %vm1934, %v1862, %v1933
    %vm1936 = vcmp.eq.f32.partialorder %v1862, 0.0
    %v1937 = vand.u32 %v1862, 2147483648
    %v1938 = vsel %vm1936, %v1937, %v1935
    %v1939 = vrsqrt.pop %v1863
    %v1940 = vmul.f32 %v1863, %v1939
    %vm1941 = vcmp.eq.f32.partialorder %v1863, inf
    %v1942 = vsel %vm1941, %v1863, %v1940
    %vm1943 = vcmp.eq.f32.partialorder %v1863, 0.0
    %v1944 = vand.u32 %v1863, 2147483648
    %v1945 = vsel %vm1943, %v1944, %v1942
    %v1946 = vrsqrt.pop %v1864
    %v1947 = vmul.f32 %v1864, %v1946
    %vm1948 = vcmp.eq.f32.partialorder %v1864, inf
    %v1949 = vsel %vm1948, %v1864, %v1947
    %vm1950 = vcmp.eq.f32.partialorder %v1864, 0.0
    %v1951 = vand.u32 %v1864, 2147483648
    %v1952 = vsel %vm1950, %v1951, %v1949
    %v1953 = vrsqrt.pop %v1865
    %v1954 = vmul.f32 %v1865, %v1953
    %vm1955 = vcmp.eq.f32.partialorder %v1865, inf
    %v1956 = vsel %vm1955, %v1865, %v1954
    %vm1957 = vcmp.eq.f32.partialorder %v1865, 0.0
    %v1958 = vand.u32 %v1865, 2147483648
    %v1959 = vsel %vm1957, %v1958, %v1956
    %v1960 = vrsqrt.pop %v1866
    %v1961 = vmul.f32 %v1866, %v1960
    %vm1962 = vcmp.eq.f32.partialorder %v1866, inf
    %v1963 = vsel %vm1962, %v1866, %v1961
    %vm1964 = vcmp.eq.f32.partialorder %v1866, 0.0
    %v1965 = vand.u32 %v1866, 2147483648
    %v1966 = vsel %vm1964, %v1965, %v1963
    %v1967 = vrsqrt.pop %v1867
    %v1968 = vmul.f32 %v1867, %v1967
    %vm1969 = vcmp.eq.f32.partialorder %v1867, inf
    %v1970 = vsel %vm1969, %v1867, %v1968
    %vm1971 = vcmp.eq.f32.partialorder %v1867, 0.0
    %v1972 = vand.u32 %v1867, 2147483648
    %v1973 = vsel %vm1971, %v1972, %v1970
    %v1974 = vrsqrt.pop %v1868
    %v1975 = vmul.f32 %v1868, %v1974
    %vm1976 = vcmp.eq.f32.partialorder %v1868, inf
    %v1977 = vsel %vm1976, %v1868, %v1975
    %vm1978 = vcmp.eq.f32.partialorder %v1868, 0.0
    %v1979 = vand.u32 %v1868, 2147483648
    %v1980 = vsel %vm1978, %v1979, %v1977
    %v1981 = vmul.f32 %v1218, %v1218
    %v1982 = vmul.f32 %v1219, %v1219
    %v1983 = vmul.f32 %v1220, %v1220
    %v1984 = vmul.f32 %v1221, %v1221
    %v1985 = vmul.f32 %v1222, %v1222
    %v1986 = vmul.f32 %v1223, %v1223
    %v1987 = vmul.f32 %v1224, %v1224
    %v1988 = vmul.f32 %v1225, %v1225
    %v1989 = vmul.f32 %v1226, %v1226
    %v1990 = vmul.f32 %v1227, %v1227
    %v1991 = vmul.f32 %v1228, %v1228
    %v1992 = vmul.f32 %v1229, %v1229
    %v1993 = vmul.f32 %v1230, %v1230
    %v1994 = vmul.f32 %v1231, %v1231
    %v1995 = vmul.f32 %v1232, %v1232
    %v1996 = vmul.f32 %v1233, %v1233
    %v1997 = vmul.f32 %v1981, 0.03125
    %v1998 = vmul.f32 %v1982, 0.03125
    %v1999 = vmul.f32 %v1983, 0.03125
    %v2000 = vmul.f32 %v1984, 0.03125
    %v2001 = vmul.f32 %v1985, 0.03125
    %v2002 = vmul.f32 %v1986, 0.03125
    %v2003 = vmul.f32 %v1987, 0.03125
    %v2004 = vmul.f32 %v1988, 0.03125
    %v2005 = vmul.f32 %v1989, 0.03125
    %v2006 = vmul.f32 %v1990, 0.03125
    %v2007 = vmul.f32 %v1991, 0.03125
    %v2008 = vmul.f32 %v1992, 0.03125
    %v2009 = vmul.f32 %v1993, 0.03125
    %v2010 = vmul.f32 %v1994, 0.03125
    %v2011 = vmul.f32 %v1995, 0.03125
    %v2012 = vmul.f32 %v1996, 0.03125
    %v2013 = vsub.f32 %v1074, %v1997
    %v2014 = vsub.f32 %v1077, %v1998
    %v2015 = vsub.f32 %v1080, %v1999
    %v2016 = vsub.f32 %v1083, %v2000
    %v2017 = vsub.f32 %v1086, %v2001
    %v2018 = vsub.f32 %v1089, %v2002
    %v2019 = vsub.f32 %v1092, %v2003
    %v2020 = vsub.f32 %v1095, %v2004
    %v2021 = vsub.f32 %v1098, %v2005
    %v2022 = vsub.f32 %v1101, %v2006
    %v2023 = vsub.f32 %v1104, %v2007
    %v2024 = vsub.f32 %v1107, %v2008
    %v2025 = vsub.f32 %v1110, %v2009
    %v2026 = vsub.f32 %v1113, %v2010
    %v2027 = vsub.f32 %v1116, %v2011
    %v2028 = vsub.f32 %v1119, %v2012
    %v2029 = vmul.f32 %v2013, 0.032258064
    %v2030 = vmul.f32 %v2014, 0.032258064
    %v2031 = vmul.f32 %v2015, 0.032258064
    %v2032 = vmul.f32 %v2016, 0.032258064
    %v2033 = vmul.f32 %v2017, 0.032258064
    %v2034 = vmul.f32 %v2018, 0.032258064
    %v2035 = vmul.f32 %v2019, 0.032258064
    %v2036 = vmul.f32 %v2020, 0.032258064
    %v2037 = vmul.f32 %v2021, 0.032258064
    %v2038 = vmul.f32 %v2022, 0.032258064
    %v2039 = vmul.f32 %v2023, 0.032258064
    %v2040 = vmul.f32 %v2024, 0.032258064
    %v2041 = vmul.f32 %v2025, 0.032258064
    %v2042 = vmul.f32 %v2026, 0.032258064
    %v2043 = vmul.f32 %v2027, 0.032258064
    %v2044 = vmul.f32 %v2028, 0.032258064
    %v2045 = vmax.f32 %v2029, 0.0
    %v2046 = vmax.f32 %v2030, 0.0
    %v2047 = vmax.f32 %v2031, 0.0
    %v2048 = vmax.f32 %v2032, 0.0
    %v2049 = vmax.f32 %v2033, 0.0
    %v2050 = vmax.f32 %v2034, 0.0
    %v2051 = vmax.f32 %v2035, 0.0
    %v2052 = vmax.f32 %v2036, 0.0
    %v2053 = vmax.f32 %v2037, 0.0
    %v2054 = vmax.f32 %v2038, 0.0
    %v2055 = vmax.f32 %v2039, 0.0
    %v2056 = vmax.f32 %v2040, 0.0
    %v2057 = vmax.f32 %v2041, 0.0
    %v2058 = vmax.f32 %v2042, 0.0
    %v2059 = vmax.f32 %v2043, 0.0
    %v2060 = vmax.f32 %v2044, 0.0
    %v2061 = vrsqrt.pop %v2045
    %v2062 = vmul.f32 %v2045, %v2061
    %vm2063 = vcmp.eq.f32.partialorder %v2045, inf
    %v2064 = vsel %vm2063, %v2045, %v2062
    %vm2065 = vcmp.eq.f32.partialorder %v2045, 0.0
    %v2066 = vand.u32 %v2045, 2147483648
    %v2067 = vsel %vm2065, %v2066, %v2064
    %v2068 = vrsqrt.pop %v2046
    %v2069 = vmul.f32 %v2046, %v2068
    %vm2070 = vcmp.eq.f32.partialorder %v2046, inf
    %v2071 = vsel %vm2070, %v2046, %v2069
    %vm2072 = vcmp.eq.f32.partialorder %v2046, 0.0
    %v2073 = vand.u32 %v2046, 2147483648
    %v2074 = vsel %vm2072, %v2073, %v2071
    %v2075 = vrsqrt.pop %v2047
    %v2076 = vmul.f32 %v2047, %v2075
    %vm2077 = vcmp.eq.f32.partialorder %v2047, inf
    %v2078 = vsel %vm2077, %v2047, %v2076
    %vm2079 = vcmp.eq.f32.partialorder %v2047, 0.0
    %v2080 = vand.u32 %v2047, 2147483648
    %v2081 = vsel %vm2079, %v2080, %v2078
    %v2082 = vrsqrt.pop %v2048
    %v2083 = vmul.f32 %v2048, %v2082
    %vm2084 = vcmp.eq.f32.partialorder %v2048, inf
    %v2085 = vsel %vm2084, %v2048, %v2083
    %vm2086 = vcmp.eq.f32.partialorder %v2048, 0.0
    %v2087 = vand.u32 %v2048, 2147483648
    %v2088 = vsel %vm2086, %v2087, %v2085
    %v2089 = vrsqrt.pop %v2049
    %v2090 = vmul.f32 %v2049, %v2089
    %vm2091 = vcmp.eq.f32.partialorder %v2049, inf
    %v2092 = vsel %vm2091, %v2049, %v2090
    %vm2093 = vcmp.eq.f32.partialorder %v2049, 0.0
    %v2094 = vand.u32 %v2049, 2147483648
    %v2095 = vsel %vm2093, %v2094, %v2092
    %v2096 = vrsqrt.pop %v2050
    %v2097 = vmul.f32 %v2050, %v2096
    %vm2098 = vcmp.eq.f32.partialorder %v2050, inf
    %v2099 = vsel %vm2098, %v2050, %v2097
    %vm2100 = vcmp.eq.f32.partialorder %v2050, 0.0
    %v2101 = vand.u32 %v2050, 2147483648
    %v2102 = vsel %vm2100, %v2101, %v2099
    %v2103 = vrsqrt.pop %v2051
    %v2104 = vmul.f32 %v2051, %v2103
    %vm2105 = vcmp.eq.f32.partialorder %v2051, inf
    %v2106 = vsel %vm2105, %v2051, %v2104
    %vm2107 = vcmp.eq.f32.partialorder %v2051, 0.0
    %v2108 = vand.u32 %v2051, 2147483648
    %v2109 = vsel %vm2107, %v2108, %v2106
    %v2110 = vrsqrt.pop %v2052
    %v2111 = vmul.f32 %v2052, %v2110
    %vm2112 = vcmp.eq.f32.partialorder %v2052, inf
    %v2113 = vsel %vm2112, %v2052, %v2111
    %vm2114 = vcmp.eq.f32.partialorder %v2052, 0.0
    %v2115 = vand.u32 %v2052, 2147483648
    %v2116 = vsel %vm2114, %v2115, %v2113
    %v2117 = vrsqrt.pop %v2053
    %v2118 = vmul.f32 %v2053, %v2117
    %vm2119 = vcmp.eq.f32.partialorder %v2053, inf
    %v2120 = vsel %vm2119, %v2053, %v2118
    %vm2121 = vcmp.eq.f32.partialorder %v2053, 0.0
    %v2122 = vand.u32 %v2053, 2147483648
    %v2123 = vsel %vm2121, %v2122, %v2120
    %v2124 = vrsqrt.pop %v2054
    %v2125 = vmul.f32 %v2054, %v2124
    %vm2126 = vcmp.eq.f32.partialorder %v2054, inf
    %v2127 = vsel %vm2126, %v2054, %v2125
    %vm2128 = vcmp.eq.f32.partialorder %v2054, 0.0
    %v2129 = vand.u32 %v2054, 2147483648
    %v2130 = vsel %vm2128, %v2129, %v2127
    %v2131 = vrsqrt.pop %v2055
    %v2132 = vmul.f32 %v2055, %v2131
    %vm2133 = vcmp.eq.f32.partialorder %v2055, inf
    %v2134 = vsel %vm2133, %v2055, %v2132
    %vm2135 = vcmp.eq.f32.partialorder %v2055, 0.0
    %v2136 = vand.u32 %v2055, 2147483648
    %v2137 = vsel %vm2135, %v2136, %v2134
    %v2138 = vrsqrt.pop %v2056
    %v2139 = vmul.f32 %v2056, %v2138
    %vm2140 = vcmp.eq.f32.partialorder %v2056, inf
    %v2141 = vsel %vm2140, %v2056, %v2139
    %vm2142 = vcmp.eq.f32.partialorder %v2056, 0.0
    %v2143 = vand.u32 %v2056, 2147483648
    %v2144 = vsel %vm2142, %v2143, %v2141
    %v2145 = vrsqrt.pop %v2057
    %v2146 = vmul.f32 %v2057, %v2145
    %vm2147 = vcmp.eq.f32.partialorder %v2057, inf
    %v2148 = vsel %vm2147, %v2057, %v2146
    %vm2149 = vcmp.eq.f32.partialorder %v2057, 0.0
    %v2150 = vand.u32 %v2057, 2147483648
    %v2151 = vsel %vm2149, %v2150, %v2148
    %v2152 = vrsqrt.pop %v2058
    %v2153 = vmul.f32 %v2058, %v2152
    %vm2154 = vcmp.eq.f32.partialorder %v2058, inf
    %v2155 = vsel %vm2154, %v2058, %v2153
    %vm2156 = vcmp.eq.f32.partialorder %v2058, 0.0
    %v2157 = vand.u32 %v2058, 2147483648
    %v2158 = vsel %vm2156, %v2157, %v2155
    %v2159 = vrsqrt.pop %v2059
    %v2160 = vmul.f32 %v2059, %v2159
    %vm2161 = vcmp.eq.f32.partialorder %v2059, inf
    %v2162 = vsel %vm2161, %v2059, %v2160
    %vm2163 = vcmp.eq.f32.partialorder %v2059, 0.0
    %v2164 = vand.u32 %v2059, 2147483648
    %v2165 = vsel %vm2163, %v2164, %v2162
    %v2166 = vrsqrt.pop %v2060
    %v2167 = vmul.f32 %v2060, %v2166
    %vm2168 = vcmp.eq.f32.partialorder %v2060, inf
    %v2169 = vsel %vm2168, %v2060, %v2167
    %vm2170 = vcmp.eq.f32.partialorder %v2060, 0.0
    %v2171 = vand.u32 %v2060, 2147483648
    %v2172 = vsel %vm2170, %v2171, %v2169
    %v2173 = vsub.f32 %v1875, %v2067
    %v2174 = vsub.f32 %v1882, %v2074
    %v2175 = vsub.f32 %v1889, %v2081
    %v2176 = vsub.f32 %v1896, %v2088
    %v2177 = vsub.f32 %v1903, %v2095
    %v2178 = vsub.f32 %v1910, %v2102
    %v2179 = vsub.f32 %v1917, %v2109
    %v2180 = vsub.f32 %v1924, %v2116
    %v2181 = vsub.f32 %v1931, %v2123
    %v2182 = vsub.f32 %v1938, %v2130
    %v2183 = vsub.f32 %v1945, %v2137
    %v2184 = vsub.f32 %v1952, %v2144
    %v2185 = vsub.f32 %v1959, %v2151
    %v2186 = vsub.f32 %v1966, %v2158
    %v2187 = vsub.f32 %v1973, %v2165
    %v2188 = vsub.f32 %v1980, %v2172
    %v2189 = vmul.f32 %v2173, %v2173
    %v2190 = vmul.f32 %v2174, %v2174
    %v2191 = vmul.f32 %v2175, %v2175
    %v2192 = vmul.f32 %v2176, %v2176
    %v2193 = vmul.f32 %v2177, %v2177
    %v2194 = vmul.f32 %v2178, %v2178
    %v2195 = vmul.f32 %v2179, %v2179
    %v2196 = vmul.f32 %v2180, %v2180
    %v2197 = vmul.f32 %v2181, %v2181
    %v2198 = vmul.f32 %v2182, %v2182
    %v2199 = vmul.f32 %v2183, %v2183
    %v2200 = vmul.f32 %v2184, %v2184
    %v2201 = vmul.f32 %v2185, %v2185
    %v2202 = vmul.f32 %v2186, %v2186
    %v2203 = vmul.f32 %v2187, %v2187
    %v2204 = vmul.f32 %v2188, %v2188
    %2221 = vset.pattern.permute.xlu0 0
    %2222 = vperm.xlu0 %2221, %v2189
    %v2223 = vpop.permute.xlu0 %2222
    %2224 = vset.pattern.permute.xlu0 0
    %2225 = vperm.xlu0 %2224, %v2190
    %v2226 = vpop.permute.xlu0 %2225
    %2227 = vset.pattern.permute.xlu0 0
    %2228 = vperm.xlu0 %2227, %v2191
    %v2229 = vpop.permute.xlu0 %2228
    %2230 = vset.pattern.permute.xlu0 0
    %2231 = vperm.xlu0 %2230, %v2192
    %v2232 = vpop.permute.xlu0 %2231
    %2233 = vset.pattern.permute.xlu0 0
    %2234 = vperm.xlu0 %2233, %v2193
    %v2235 = vpop.permute.xlu0 %2234
    %2236 = vset.pattern.permute.xlu0 0
    %2237 = vperm.xlu0 %2236, %v2194
    %v2238 = vpop.permute.xlu0 %2237
    %2239 = vset.pattern.permute.xlu0 0
    %2240 = vperm.xlu0 %2239, %v2195
    %v2241 = vpop.permute.xlu0 %2240
    %2242 = vset.pattern.permute.xlu0 0
    %2243 = vperm.xlu0 %2242, %v2196
    %v2244 = vpop.permute.xlu0 %2243
    %2245 = vset.pattern.permute.xlu0 0
    %2246 = vperm.xlu0 %2245, %v2197
    %v2247 = vpop.permute.xlu0 %2246
    %2248 = vset.pattern.permute.xlu0 0
    %2249 = vperm.xlu0 %2248, %v2198
    %v2250 = vpop.permute.xlu0 %2249
    %2251 = vset.pattern.permute.xlu0 0
    %2252 = vperm.xlu0 %2251, %v2199
    %v2253 = vpop.permute.xlu0 %2252
    %2254 = vset.pattern.permute.xlu0 0
    %2255 = vperm.xlu0 %2254, %v2200
    %v2256 = vpop.permute.xlu0 %2255
    %2257 = vset.pattern.permute.xlu0 0
    %2258 = vperm.xlu0 %2257, %v2201
    %v2259 = vpop.permute.xlu0 %2258
    %2260 = vset.pattern.permute.xlu0 0
    %2261 = vperm.xlu0 %2260, %v2202
    %v2262 = vpop.permute.xlu0 %2261
    %2263 = vset.pattern.permute.xlu0 0
    %2264 = vperm.xlu0 %2263, %v2203
    %v2265 = vpop.permute.xlu0 %2264
    %2266 = vset.pattern.permute.xlu0 0
    %2267 = vperm.xlu0 %2266, %v2204
    %v2268 = vpop.permute.xlu0 %2267
    %v2269 = vlaneseq
    %v2270 = vshrl.u32 %v2269, 7
    %v2271 = vsub.s32 %v194, %v2270
    %v2272 = vrot.slane %v2223, %v2271
    %v2273 = vlaneseq
    %v2274 = vshrl.u32 %v2273, 7
    %v2275 = vsub.s32 %v199, %v2274
    %v2276 = vrot.slane %v2226, %v2275
    %v2277 = vsel %vm204, %v2276, %v2272
    %v2278 = vlaneseq
    %v2279 = vshrl.u32 %v2278, 7
    %v2280 = vsub.s32 %v194, %v2279
    %v2281 = vrot.slane %v2229, %v2280
    %v2282 = vlaneseq
    %v2283 = vshrl.u32 %v2282, 7
    %v2284 = vsub.s32 %v199, %v2283
    %v2285 = vrot.slane %v2232, %v2284
    %v2286 = vsel %vm204, %v2285, %v2281
    %v2287 = vlaneseq
    %v2288 = vshrl.u32 %v2287, 7
    %v2289 = vsub.s32 %v194, %v2288
    %v2290 = vrot.slane %v2235, %v2289
    %v2291 = vlaneseq
    %v2292 = vshrl.u32 %v2291, 7
    %v2293 = vsub.s32 %v199, %v2292
    %v2294 = vrot.slane %v2238, %v2293
    %v2295 = vsel %vm204, %v2294, %v2290
    %v2296 = vlaneseq
    %v2297 = vshrl.u32 %v2296, 7
    %v2298 = vsub.s32 %v194, %v2297
    %v2299 = vrot.slane %v2241, %v2298
    %v2300 = vlaneseq
    %v2301 = vshrl.u32 %v2300, 7
    %v2302 = vsub.s32 %v199, %v2301
    %v2303 = vrot.slane %v2244, %v2302
    %v2304 = vsel %vm204, %v2303, %v2299
    %v2305 = vlaneseq
    %v2306 = vshrl.u32 %v2305, 7
    %v2307 = vsub.s32 %v194, %v2306
    %v2308 = vrot.slane %v2247, %v2307
    %v2309 = vlaneseq
    %v2310 = vshrl.u32 %v2309, 7
    %v2311 = vsub.s32 %v199, %v2310
    %v2312 = vrot.slane %v2250, %v2311
    %v2313 = vsel %vm204, %v2312, %v2308
    %v2314 = vlaneseq
    %v2315 = vshrl.u32 %v2314, 7
    %v2316 = vsub.s32 %v194, %v2315
    %v2317 = vrot.slane %v2253, %v2316
    %v2318 = vlaneseq
    %v2319 = vshrl.u32 %v2318, 7
    %v2320 = vsub.s32 %v199, %v2319
    %v2321 = vrot.slane %v2256, %v2320
    %v2322 = vsel %vm204, %v2321, %v2317
    %v2323 = vlaneseq
    %v2324 = vshrl.u32 %v2323, 7
    %v2325 = vsub.s32 %v194, %v2324
    %v2326 = vrot.slane %v2259, %v2325
    %v2327 = vlaneseq
    %v2328 = vshrl.u32 %v2327, 7
    %v2329 = vsub.s32 %v199, %v2328
    %v2330 = vrot.slane %v2262, %v2329
    %v2331 = vsel %vm204, %v2330, %v2326
    %v2332 = vlaneseq
    %v2333 = vshrl.u32 %v2332, 7
    %v2334 = vsub.s32 %v194, %v2333
    %v2335 = vrot.slane %v2265, %v2334
    %v2336 = vlaneseq
    %v2337 = vshrl.u32 %v2336, 7
    %v2338 = vsub.s32 %v199, %v2337
    %v2339 = vrot.slane %v2268, %v2338
    %v2340 = vsel %vm204, %v2339, %v2335
    %v2341 = vsel %vm269, %v2286, %v2277
    %v2342 = vsel %vm271, %v2295, %v2341
    %v2343 = vsel %vm273, %v2304, %v2342
    %v2344 = vsel %vm275, %v2313, %v2343
    %v2345 = vsel %vm277, %v2322, %v2344
    %v2346 = vsel %vm279, %v2331, %v2345
    %v2347 = vsel %vm281, %v2340, %v2346
    %v2349 = vsel %vm284, %v2347, 0.0
    %2350 = vadd.xlane.f32.xlu0 %v2349
    %v2351 = vpop.xlane.xlu0 %2350
    %v2352 = vrot.slane %v2351, 4
    %v2353 = vadd.f32 %v2351, %v2352
    %v2354 = vrot.slane %v2353, 2
    %v2355 = vadd.f32 %v2353, %v2354
    %v2356 = vrot.slane %v2355, 1
    %v2357 = vadd.f32 %v2355, %v2356
    %s2358 = vtos %v2357
    %v2359 = vrcp.pop 128.0
    %s2360 = vtos %v2359
    %s2361 = smul.f32 %s2358, %s2360
    %vm2362 = vcmp.eq.s32.totalorder %v194, 0
    %vm2363 = vcmp.eq.s32.totalorder %v194, 1
    %vm2364 = vcmp.eq.s32.totalorder %v194, 2
    %v2365 = vstv %s2361
    %v2366 = vsel %vm2364, %v2365, 0.0
    %v2367 = vstv %s1788
    %v2368 = vsel %vm2363, %v2367, %v2366
    %v2369 = vstv %s1544
    %v2370 = vsel %vm2362, %v2369, %v2368
    %2371 = vst [vmem:[#allocation7] sm:$0x1] %v2370
    // Predicated region
    $region18: #{tpu_custom_call.1} parent=1 // pred_check
      _
    $region19: #{tpu_custom_call.1} parent=1 // pred_check_branch
      %2373 = sbr.rel (0) target = $region21
    $region20: #{tpu_custom_call.1} parent=1 // pred_region
      %s2375 = ssub.s32 16, 16
      %2376 = vsyncadd [#allocation4], %s2375
      %s2378 = sshll.u32 [#allocation7], 4
      %s2379 = int_to_ptr.vmem [resolvable:$true] %s2378
      %2381 = dma.vmem_to_hbm [thread:$0]  %s2379, 16, %s2, [#allocation4]
    $region21: #{tpu_custom_call.1} parent=1 // pred_fallthru
      _
    // Predicated region
    $region22: #{tpu_custom_call.1} parent=1 // pred_check
      _
    $region23: #{tpu_custom_call.1} parent=1 // pred_check_branch
      %2383 = sbr.rel (0) target = $region25
    $region24: #{tpu_custom_call.1} parent=1 // pred_region
      %2384 = dma.done [#allocation4], 16
    $region25: #{tpu_custom_call.1} parent=1 // pred_fallthru
      _
    %2385 = vsyncpa [#allocation3], 1
    %2386 = vsyncpa [#allocation6], 1
    %2387 = vsyncpa [#allocation4], 1

</llo_original>
